<compile_context>
chip_gen: v7x
topology: tpu7x:2x2x1
jax: 0.10.0
libtpu: 0.0.40
codegen_flags: <defaults>
</compile_context>

<pallas_src>
import functools

import jax
import jax.numpy as jnp
from jax import lax
from jax.experimental import pallas as pl
from jax.experimental.pallas import tpu as pltpu

KH = 10          # conv kernel height
KW = 1           # conv kernel width
STRIDE_H = 2
PAD_H = 5
REDUCTION = 16   # SEBlock reduction
BN_EPS = 1e-5


def _freq_conv_block_kernel(patches_ref, wmat_ref, shift_ref, w1_ref, w2_ref,
                            pool_ref, bcast_ref, out_ref):
    # ---- Conv2d (+ folded bias & BN) as one MXU matmul: (Cout, K) @ (K, N) ----
    p = patches_ref[0]                                                     # (K, N)
    y = jnp.dot(wmat_ref[...], p, preferred_element_type=jnp.float32)      # (Cout, N)
    y = y + shift_ref[...]                                                 # (Cout, 1) bcast

    # TODO(synk): Dropout(0.5) is identity in eval mode; training-mode RNG mask not implemented.

    # ---- ReLU ----
    y = jnp.maximum(y, 0.0)

    # ---- SEBlock ----
    # Per-batch global average pool over tokens via a constant pooling matrix.
    pooled = jnp.dot(y, pool_ref[...], preferred_element_type=jnp.float32)  # (Cout, G)

    # FC1 -> ReLU -> FC2 -> sigmoid on the VPU (broadcast-multiply + reduce), off the MXU.
    w1 = w1_ref[...]                                                        # (Cred, Cout)
    h = jnp.sum(w1[:, :, None] * pooled[None, :, :], axis=1)                # (Cred, G)
    h = jnp.maximum(h, 0.0)
    w2 = w2_ref[...]                                                        # (Cout, Cred)
    s = jax.nn.sigmoid(jnp.sum(w2[:, :, None] * h[None, :, :], axis=1))     # (Cout, G)

    # Broadcast per-batch scale back over tokens and rescale.
    s_full = jnp.dot(s, bcast_ref[...], preferred_element_type=jnp.float32)  # (Cout, N)
    out_ref[0] = (y * s_full).astype(out_ref.dtype)


def freq_conv_block(x, params, *, matmul_dtype=jnp.float32, group_size=None):
    """x: (B, Cin, H, W) float32 (NCHW). Returns (B, Cout, H_out, W) (NCHW)."""
    conv_w, conv_b, gamma, beta, rmean, rvar, fc1_w, fc2_w = params
    B, Cin, H, W = x.shape
    Cout = conv_w.shape[0]
    Cred = fc1_w.shape[0]
    H_out = (H + 2 * PAD_H - KH) // STRIDE_H + 1
    HW = H_out * W
    K = Cin * KH

    if group_size is None:
        # Fold as many batch elements as possible (<= 8) into one grid step.
        # NOTE(v7x): with small B, prefer group_size = B // 2 so both TensorCores
        # get a "parallel" grid step.
        group_size = next(g for g in range(min(B, 8), 0, -1) if B % g == 0)
    G = group_size
    assert B % G == 0, (B, G)
    n_g = B // G
    N = G * HW                                             # token (lane) dimension

    # ---- im2col (wrapper glue; fused by XLA under jit into one patches copy) ----
    xp = jnp.pad(x, ((0, 0), (0, 0), (PAD_H, PAD_H), (0, 0)))              # (B,Cin,H+10,W)
    cols = jnp.stack(
        [xp[:, :, kh:kh + STRIDE_H * (H_out - 1) + 1:STRIDE_H, :] for kh in range(KH)],
        axis=2)                                                             # (B,Cin,KH,H_out,W)
    patches = cols.transpose(1, 2, 0, 3, 4).reshape(K, B, HW)               # (K,B,HW), k=ci*KH+kh
    patches = patches.reshape(K, n_g, N).transpose(1, 0, 2)                 # (n_g, K, N)
    patches = patches.astype(matmul_dtype)

    # ---- parameter folding: BN scale + conv bias into the weights (glue) ----
    scale = gamma / jnp.sqrt(rvar + BN_EPS)
    wmat = conv_w[:, :, :, 0].reshape(Cout, K) * scale[:, None]             # (Cout, K)
    wmat = wmat.astype(matmul_dtype)
    shift = ((conv_b - rmean) * scale + beta).reshape(Cout, 1).astype(jnp.float32)

    # ---- constant pooling / broadcast matrices for per-batch SE over tokens ----
    g_ids = jnp.arange(N, dtype=jnp.int32) // HW                            # token -> local batch
    onehot = (g_ids[None, :] == jnp.arange(G, dtype=jnp.int32)[:, None]).astype(jnp.float32)
    pool_mat = onehot.T / float(HW)                                         # (N, G)
    bcast_mat = onehot                                                      # (G, N)

    out = pl.pallas_call(
        _freq_conv_block_kernel,
        out_shape=jax.ShapeDtypeStruct((n_g, Cout, N), jnp.float32),
        grid=(n_g,),
        in_specs=[
            pl.BlockSpec((1, K, N), lambda i: (i, 0, 0)),      # patches (per group)
            pl.BlockSpec((Cout, K), lambda i: (0, 0)),         # folded conv weight (VMEM-resident)
            pl.BlockSpec((Cout, 1), lambda i: (0, 0)),         # folded bias/BN shift
            pl.BlockSpec((Cred, Cout), lambda i: (0, 0)),      # SE fc1 weight
            pl.BlockSpec((Cout, Cred), lambda i: (0, 0)),      # SE fc2 weight
            pl.BlockSpec((N, G), lambda i: (0, 0)),            # pooling matrix
            pl.BlockSpec((G, N), lambda i: (0, 0)),            # broadcast matrix
        ],
        out_specs=pl.BlockSpec((1, Cout, N), lambda i: (i, 0, 0)),
        compiler_params=pltpu.CompilerParams(dimension_semantics=("parallel",)),
    )(patches, wmat, shift, fc1_w.astype(jnp.float32), fc2_w.astype(jnp.float32),
      pool_mat, bcast_mat)

    # (n_g, Cout, G*HW) -> NCHW
    out = out.reshape(n_g, Cout, G, H_out, W).transpose(0, 2, 1, 3, 4).reshape(B, Cout, H_out, W)
    return out.astype(x.dtype)


def reference(x, params):
    """Pure-JAX reference matching PyTorch eval-mode semantics."""
    conv_w, conv_b, gamma, beta, rmean, rvar, fc1_w, fc2_w = params
    y = lax.conv_general_dilated(
        x, conv_w, window_strides=(STRIDE_H, 1),
        padding=((PAD_H, PAD_H), (0, 0)),
        dimension_numbers=("NCHW", "OIHW", "NCHW"))
    y = y + conv_b[None, :, None, None]
    y = (y - rmean[None, :, None, None]) / jnp.sqrt(rvar + BN_EPS)[None, :, None, None]
    y = y * gamma[None, :, None, None] + beta[None, :, None, None]
    y = jnp.maximum(y, 0.0)
    pooled = y.mean(axis=(2, 3))                                            # (B, Cout)
    h = jnp.maximum(pooled @ fc1_w.T, 0.0)
    s = jax.nn.sigmoid(h @ fc2_w.T)
    return y * s[:, :, None, None]


if __name__ == "__main__":
    B, Cin, H, W = 2, 4, 16, 16
    Cout = 32
    Cred = Cout // REDUCTION

    key = jax.random.PRNGKey(0)
    ks = jax.random.split(key, 9)
    x = jax.random.normal(ks[0], (B, Cin, H, W), dtype=jnp.float32)

    conv_w = 0.1 * jax.random.normal(ks[1], (Cout, Cin, KH, KW), dtype=jnp.float32)
    conv_b = 0.1 * jax.random.normal(ks[2], (Cout,), dtype=jnp.float32)
    gamma = 1.0 + 0.1 * jax.random.normal(ks[3], (Cout,), dtype=jnp.float32)
    beta = 0.1 * jax.random.normal(ks[4], (Cout,), dtype=jnp.float32)
    rmean = 0.1 * jax.random.normal(ks[5], (Cout,), dtype=jnp.float32)
    rvar = jnp.abs(jax.random.normal(ks[6], (Cout,), dtype=jnp.float32)) + 0.5
    fc1_w = 0.2 * jax.random.normal(ks[7], (Cred, Cout), dtype=jnp.float32)
    fc2_w = 0.2 * jax.random.normal(ks[8], (Cout, Cred), dtype=jnp.float32)

    params = (conv_w, conv_b, gamma, beta, rmean, rvar, fc1_w, fc2_w)

    fcb_f32 = jax.jit(functools.partial(freq_conv_block, matmul_dtype=jnp.float32))
    fcb_bf16 = jax.jit(functools.partial(freq_conv_block, matmul_dtype=jnp.bfloat16))

    ref = jax.block_until_ready(reference(x, params))

    # f32 matmul path: exact-ish vs. the f32 reference.
    out = jax.block_until_ready(fcb_f32(x, params))
    assert out.shape == ref.shape, (out.shape, ref.shape)
    assert jnp.allclose(out, ref, rtol=1e-3, atol=1e-3), float(jnp.max(jnp.abs(out - ref)))

    # bf16 matmul-operand path (half HBM traffic for patches/weights; f32 accumulate).
    out_bf16 = jax.block_until_ready(fcb_bf16(x, params))
    assert out_bf16.shape == ref.shape, (out_bf16.shape, ref.shape)
    assert jnp.allclose(out_bf16, ref, rtol=3e-2, atol=3e-2), \
        float(jnp.max(jnp.abs(out_bf16 - ref)))

    print("KERNEL_OK")
</pallas_src>

<mosaic_0001>
module attributes {stable_mosaic.version = 11 : i64} {
  func.func @_freq_conv_block_kernel(%arg0: i32, %arg1: memref<1x40x288xf32, #tpu.memory_space<vmem>>, %arg2: memref<32x40xf32, #tpu.memory_space<vmem>>, %arg3: memref<32x1xf32, #tpu.memory_space<vmem>>, %arg4: memref<2x32xf32, #tpu.memory_space<vmem>>, %arg5: memref<32x2xf32, #tpu.memory_space<vmem>>, %arg6: memref<288x2xf32, #tpu.memory_space<vmem>>, %arg7: memref<2x288xf32, #tpu.memory_space<vmem>>, %arg8: memref<1x32x288xf32, #tpu.memory_space<vmem>>) attributes {dimension_semantics = [#tpu.dimension_semantics<parallel>], iteration_bounds = array<i64: 1>, scalar_prefetch = 0 : i64, scratch_operands = 0 : i64, tpu.core_type = #tpu.core_type<tc>, window_params = [{transform_indices = @transform_0, window_bounds = array<i64: 1, 40, 288>}, {pipeline_mode = #tpu.pipeline_mode<synchronous>, transform_indices = @transform_1, window_bounds = array<i64: 32, 40>}, {pipeline_mode = #tpu.pipeline_mode<synchronous>, transform_indices = @transform_2, window_bounds = array<i64: 32, 1>}, {pipeline_mode = #tpu.pipeline_mode<synchronous>, transform_indices = @transform_3, window_bounds = array<i64: 2, 32>}, {pipeline_mode = #tpu.pipeline_mode<synchronous>, transform_indices = @transform_4, window_bounds = array<i64: 32, 2>}, {pipeline_mode = #tpu.pipeline_mode<synchronous>, transform_indices = @transform_5, window_bounds = array<i64: 288, 2>}, {pipeline_mode = #tpu.pipeline_mode<synchronous>, transform_indices = @transform_6, window_bounds = array<i64: 2, 288>}, {transform_indices = @transform_7, window_bounds = array<i64: 1, 32, 288>}]} {
    %c0 = arith.constant 0 : index
    %c0_0 = arith.constant 0 : index
    %c0_1 = arith.constant 0 : index
    %0 = vector.load %arg1[%c0, %c0_0, %c0_1] : memref<1x40x288xf32, #tpu.memory_space<vmem>>, vector<1x40x288xf32>
    %1 = vector.shape_cast %0 : vector<1x40x288xf32> to vector<40x288xf32>
    %c0_2 = arith.constant 0 : index
    %c0_3 = arith.constant 0 : index
    %2 = vector.load %arg2[%c0_2, %c0_3] : memref<32x40xf32, #tpu.memory_space<vmem>>, vector<32x40xf32>
    %cst = arith.constant dense<0.000000e+00> : vector<32x288xf32>
    %3 = tpu.matmul %2, %1, %cst {dimension_numbers = #tpu.dot_dimension_numbers<[1], [0], [0], [1], [0, 0, 1, 1], [], []>} : vector<32x40xf32>, vector<40x288xf32>, vector<32x288xf32> -> vector<32x288xf32>
    %c0_4 = arith.constant 0 : index
    %c0_5 = arith.constant 0 : index
    %4 = vector.load %arg3[%c0_4, %c0_5] : memref<32x1xf32, #tpu.memory_space<vmem>>, vector<32x1xf32>
    %5 = vector.broadcast %4 : vector<32x1xf32> to vector<32x288xf32>
    %6 = arith.addf %3, %5 : vector<32x288xf32>
    %cst_6 = arith.constant 0.000000e+00 : f32
    %7 = vector.broadcast %cst_6 : f32 to vector<32x288xf32>
    %8 = arith.maximumf %6, %7 : vector<32x288xf32>
    %c0_7 = arith.constant 0 : index
    %c0_8 = arith.constant 0 : index
    %9 = vector.load %arg6[%c0_7, %c0_8] : memref<288x2xf32, #tpu.memory_space<vmem>>, vector<288x2xf32>
    %cst_9 = arith.constant dense<0.000000e+00> : vector<32x2xf32>
    %10 = tpu.matmul %8, %9, %cst_9 {dimension_numbers = #tpu.dot_dimension_numbers<[1], [0], [0], [1], [0, 0, 1, 1], [], []>} : vector<32x288xf32>, vector<288x2xf32>, vector<32x2xf32> -> vector<32x2xf32>
    %c0_10 = arith.constant 0 : index
    %c0_11 = arith.constant 0 : index
    %11 = vector.load %arg4[%c0_10, %c0_11] : memref<2x32xf32, #tpu.memory_space<vmem>>, vector<2x32xf32>
    %12 = vector.shape_cast %11 : vector<2x32xf32> to vector<2x32x1xf32>
    %13 = vector.shape_cast %10 : vector<32x2xf32> to vector<1x32x2xf32>
    %14 = vector.broadcast %12 : vector<2x32x1xf32> to vector<2x32x2xf32>
    %15 = vector.broadcast %13 : vector<1x32x2xf32> to vector<2x32x2xf32>
    %16 = arith.mulf %14, %15 : vector<2x32x2xf32>
    %cst_12 = arith.constant dense<0.000000e+00> : vector<2x2xf32>
    %17 = vector.multi_reduction <add>, %16, %cst_12 [1] : vector<2x32x2xf32> to vector<2x2xf32>
    %cst_13 = arith.constant 0.000000e+00 : f32
    %18 = vector.broadcast %cst_13 : f32 to vector<2x2xf32>
    %19 = arith.maximumf %17, %18 : vector<2x2xf32>
    %c0_14 = arith.constant 0 : index
    %c0_15 = arith.constant 0 : index
    %20 = vector.load %arg5[%c0_14, %c0_15] : memref<32x2xf32, #tpu.memory_space<vmem>>, vector<32x2xf32>
    %21 = vector.shape_cast %20 : vector<32x2xf32> to vector<32x2x1xf32>
    %22 = vector.shape_cast %19 : vector<2x2xf32> to vector<1x2x2xf32>
    %23 = vector.broadcast %21 : vector<32x2x1xf32> to vector<32x2x2xf32>
    %24 = vector.broadcast %22 : vector<1x2x2xf32> to vector<32x2x2xf32>
    %25 = arith.mulf %23, %24 : vector<32x2x2xf32>
    %cst_16 = arith.constant dense<0.000000e+00> : vector<32x2xf32>
    %26 = vector.multi_reduction <add>, %25, %cst_16 [1] : vector<32x2x2xf32> to vector<32x2xf32>
    %27 = arith.negf %26 : vector<32x2xf32>
    %28 = math.exp %27 : vector<32x2xf32>
    %cst_17 = arith.constant 1.000000e+00 : f32
    %29 = vector.broadcast %cst_17 : f32 to vector<32x2xf32>
    %30 = arith.addf %29, %28 : vector<32x2xf32>
    %31 = arith.divf %29, %30 : vector<32x2xf32>
    %c0_18 = arith.constant 0 : index
    %c0_19 = arith.constant 0 : index
    %32 = vector.load %arg7[%c0_18, %c0_19] : memref<2x288xf32, #tpu.memory_space<vmem>>, vector<2x288xf32>
    %cst_20 = arith.constant dense<0.000000e+00> : vector<32x288xf32>
    %33 = tpu.matmul %31, %32, %cst_20 {dimension_numbers = #tpu.dot_dimension_numbers<[1], [0], [0], [1], [0, 0, 1, 1], [], []>} : vector<32x2xf32>, vector<2x288xf32>, vector<32x288xf32> -> vector<32x288xf32>
    %34 = arith.mulf %8, %33 : vector<32x288xf32>
    %c0_21 = arith.constant 0 : index
    %c0_22 = arith.constant 0 : index
    %c0_23 = arith.constant 0 : index
    %35 = vector.load %arg8[%c0_21, %c0_22, %c0_23] : memref<1x32x288xf32, #tpu.memory_space<vmem>>, vector<1x32x288xf32>
    %36 = vector.shape_cast %35 : vector<1x32x288xf32> to vector<32x288xf32>
    %37 = vector.shape_cast %34 : vector<32x288xf32> to vector<1x32x288xf32>
    tpu.vector_store %arg8[%c0_21, %c0_22, %c0_23], %37 {strides = array<i32>} : memref<1x32x288xf32, #tpu.memory_space<vmem>>, vector<1x32x288xf32>,
    return
  }
  func.func @transform_0(%arg0: i32) -> (i32, i32, i32) {
    %c0_i32 = arith.constant 0 : i32
    %c0_i32_0 = arith.constant 0 : i32
    %c0_i32_1 = arith.constant 0 : i32
    return %arg0, %c0_i32, %c0_i32_0 : i32, i32, i32
  }
  func.func @transform_1(%arg0: i32) -> (i32, i32) {
    %c0_i32 = arith.constant 0 : i32
    %c0_i32_0 = arith.constant 0 : i32
    %c0_i32_1 = arith.constant 0 : i32
    return %c0_i32, %c0_i32_0 : i32, i32
  }
  func.func @transform_2(%arg0: i32) -> (i32, i32) {
    %c0_i32 = arith.constant 0 : i32
    %c0_i32_0 = arith.constant 0 : i32
    %c0_i32_1 = arith.constant 0 : i32
    return %c0_i32, %c0_i32_0 : i32, i32
  }
  func.func @transform_3(%arg0: i32) -> (i32, i32) {
    %c0_i32 = arith.constant 0 : i32
    %c0_i32_0 = arith.constant 0 : i32
    %c0_i32_1 = arith.constant 0 : i32
    return %c0_i32, %c0_i32_0 : i32, i32
  }
  func.func @transform_4(%arg0: i32) -> (i32, i32) {
    %c0_i32 = arith.constant 0 : i32
    %c0_i32_0 = arith.constant 0 : i32
    %c0_i32_1 = arith.constant 0 : i32
    return %c0_i32, %c0_i32_0 : i32, i32
  }
  func.func @transform_5(%arg0: i32) -> (i32, i32) {
    %c0_i32 = arith.constant 0 : i32
    %c0_i32_0 = arith.constant 0 : i32
    %c0_i32_1 = arith.constant 0 : i32
    return %c0_i32, %c0_i32_0 : i32, i32
  }
  func.func @transform_6(%arg0: i32) -> (i32, i32) {
    %c0_i32 = arith.constant 0 : i32
    %c0_i32_0 = arith.constant 0 : i32
    %c0_i32_1 = arith.constant 0 : i32
    return %c0_i32, %c0_i32_0 : i32, i32
  }
  func.func @transform_7(%arg0: i32) -> (i32, i32, i32) {
    %c0_i32 = arith.constant 0 : i32
    %c0_i32_0 = arith.constant 0 : i32
    %c0_i32_1 = arith.constant 0 : i32
    return %arg0, %c0_i32, %c0_i32_0 : i32, i32, i32
  }
}

</mosaic_0001>

<llo_original>
// kernel: freq_conv_block.1
$region0: #{freq_conv_block.1}
  #allocation0 [shape = 'u32[]', space=smem, size = 0x4, offset = 0x4, fixed_abs, tag = 'smem constant byte address 0x4 - core index']
  #allocation1 [shape = 'u32[144,128]{1,0:T(1,128)}', space=vmem, size = 0x12000, scoped, tag = 'internal scratch']
  %s0 = inlined_call_operand.vmem [shape: f32[1,40,288], index: 0, kind: input, shape index: {}]
  %s1 = inlined_call_operand.vmem [shape: f32[32,40], index: 1, kind: input, shape index: {}]
  %s2 = inlined_call_operand.vmem [shape: f32[32,1], index: 2, kind: input, shape index: {}]
  %s3 = inlined_call_operand.vmem [shape: f32[2,32], index: 3, kind: input, shape index: {}]
  %s4 = inlined_call_operand.vmem [shape: f32[32,2], index: 4, kind: input, shape index: {}]
  %s5 = inlined_call_operand.vmem [shape: f32[288,2], index: 5, kind: input, shape index: {}]
  %s6 = inlined_call_operand.vmem [shape: f32[2,288], index: 6, kind: input, shape index: {}]
  %s7 = inlined_call_operand.vmem [shape: f32[1,32,288], index: 7, kind: output, shape index: {}]
  %s8 = sld [smem:[#allocation0]]
  $region38: #{freq_conv_block.1} parent=0
    _
  %s10 = ssub.s32 1, %s8
  %s11 = scalar_select 0, %s10, %s8
  // Predicated region
  $region2: #{freq_conv_block.1} parent=0 // pred_check
    _
  $region3: #{freq_conv_block.1} parent=0 // pred_check_branch
    %13 = sbr.rel (0) target = $region5
  $region4: #{freq_conv_block.1} parent=0 // pred_region
    _
  $region5: #{freq_conv_block.1} parent=0 // pred_fallthru
    _
  // Predicated region
  $region6: #{freq_conv_block.1} parent=0 // pred_check
    _
  $region7: #{freq_conv_block.1} parent=0 // pred_check_branch
    %15 = sbr.rel (0) target = $region9
  $region8: #{freq_conv_block.1} parent=0 // pred_region
    _
  $region9: #{freq_conv_block.1} parent=0 // pred_fallthru
    _
  // Predicated region
  $region10: #{freq_conv_block.1} parent=0 // pred_check
    _
  $region11: #{freq_conv_block.1} parent=0 // pred_check_branch
    %17 = sbr.rel (0) target = $region13
  $region12: #{freq_conv_block.1} parent=0 // pred_region
    _
  $region13: #{freq_conv_block.1} parent=0 // pred_fallthru
    _
  // Predicated region
  $region14: #{freq_conv_block.1} parent=0 // pred_check
    _
  $region15: #{freq_conv_block.1} parent=0 // pred_check_branch
    %19 = sbr.rel (0) target = $region17
  $region16: #{freq_conv_block.1} parent=0 // pred_region
    _
  $region17: #{freq_conv_block.1} parent=0 // pred_fallthru
    _
  // Predicated region
  $region18: #{freq_conv_block.1} parent=0 // pred_check
    _
  $region19: #{freq_conv_block.1} parent=0 // pred_check_branch
    %21 = sbr.rel (0) target = $region21
  $region20: #{freq_conv_block.1} parent=0 // pred_region
    _
  $region21: #{freq_conv_block.1} parent=0 // pred_fallthru
    _
  // Predicated region
  $region22: #{freq_conv_block.1} parent=0 // pred_check
    _
  $region23: #{freq_conv_block.1} parent=0 // pred_check_branch
    %23 = sbr.rel (0) target = $region25
  $region24: #{freq_conv_block.1} parent=0 // pred_region
    _
  $region25: #{freq_conv_block.1} parent=0 // pred_fallthru
    _
  // Predicated region
  $region26: #{freq_conv_block.1} parent=0 // pred_check
    _
  $region27: #{freq_conv_block.1} parent=0 // pred_check_branch
    %25 = sbr.rel (0) target = $region29
  $region28: #{freq_conv_block.1} parent=0 // pred_region
    _
  $region29: #{freq_conv_block.1} parent=0 // pred_fallthru
    _
  %v26 = vld [vmem:[%s0] sm:$0xff]
  %v27 = vld [vmem:[%s0 + $0x8] sm:$0xff]
  %v28 = vld [vmem:[%s0 + $0x10] sm:$0xff]
  %v29 = vld [vmem:[%s0 + $0x18] sm:$0xff]
  %v30 = vld [vmem:[%s0 + $0x20] sm:$0xff]
  %v31 = vld [vmem:[%s0 + $0x28] sm:$0xff]
  %v32 = vld [vmem:[%s0 + $0x30] sm:$0xff]
  %v33 = vld [vmem:[%s0 + $0x38] sm:$0xff]
  %v34 = vld [vmem:[%s0 + $0x40] sm:$0xff]
  %v35 = vld [vmem:[%s0 + $0x48] sm:$0xff]
  %v36 = vld [vmem:[%s0 + $0x50] sm:$0xff]
  %v37 = vld [vmem:[%s0 + $0x58] sm:$0xff]
  %v38 = vld [vmem:[%s0 + $0x60] sm:$0xff]
  %v39 = vld [vmem:[%s0 + $0x68] sm:$0xff]
  %v40 = vld [vmem:[%s0 + $0x70] sm:$0xff]
  %v41 = vld [vmem:[%s1] sm:$0xff]
  %v42 = vld [vmem:[%s1 + $0x8] sm:$0xff]
  %v43 = vld [vmem:[%s1 + $0x10] sm:$0xff]
  %v44 = vld [vmem:[%s1 + $0x18] sm:$0xff]
  %v45 = vld [vmem:[%s2] sm:$0xff]
  %v46 = vld [vmem:[%s2 + $0x8] sm:$0xff]
  %v47 = vld [vmem:[%s2 + $0x10] sm:$0xff]
  %v48 = vld [vmem:[%s2 + $0x18] sm:$0xff]
  %50 = vset.pattern.permute.xlu0 0
  %51 = vperm.xlu0 %50, %v45
  %v52 = vpop.permute.xlu0 %51
  %55 = vset.pattern.permute.xlu0 0
  %56 = vperm.xlu0 %55, %v46
  %v57 = vpop.permute.xlu0 %56
  %60 = vset.pattern.permute.xlu0 0
  %61 = vperm.xlu0 %60, %v47
  %v62 = vpop.permute.xlu0 %61
  %65 = vset.pattern.permute.xlu0 0
  %66 = vperm.xlu0 %65, %v48
  %v67 = vpop.permute.xlu0 %66
  %vm69 = vcmask 326656
  %v71 = vsel %vm69, %v41, 0
  %v74 = vsel %vm69, %v42, 0
  %v77 = vsel %vm69, %v43, 0
  %v80 = vsel %vm69, %v44, 0
  %82 = vmatprep.subr.mxu0 %v27
  %83 = vmatpush1.msra.mxu0 %v26
  %84 = vmatprep.subr.mxu0 %v30
  %85 = vmatpush1.msra.mxu0 %v29
  %86 = vmatprep.subr.mxu0 %v33
  %87 = vmatpush1.msra.mxu0 %v32
  %88 = vmatprep.subr.mxu0 %v36
  %89 = vmatpush1.msra.mxu0 %v35
  %90 = vmatprep.subr.mxu0 %v39
  %91 = vmatpush1.msra.mxu0 %v38
  %92 = vmatprep.subr.mxu0 0.0
  %93 = vmatpush1.msra.mxu0 0.0
  %94 = vmatprep.subr.mxu0 0.0
  %95 = vmatpush1.msra.mxu0 0.0
  %96 = vmatprep.subr.mxu0 0.0
  %97 = vmatpush1.msra.mxu0 0.0
  %98 = vmatprep.subr.mxu0 0.0
  %99 = vmatpush1.msra.mxu0 0.0
  %100 = vmatprep.subr.mxu0 0.0
  %101 = vmatpush1.msra.mxu0 0.0
  %102 = vmatprep.subr.mxu0 0.0
  %103 = vmatpush1.msra.mxu0 0.0
  %104 = vmatprep.subr.mxu0 0.0
  %105 = vmatpush1.msra.mxu0 0.0
  %106 = vmatprep.subr.mxu0 0.0
  %107 = vmatpush1.msra.mxu0 0.0
  %108 = vmatprep.subr.mxu0 0.0
  %109 = vmatpush1.msra.mxu0 0.0
  %110 = vmatprep.subr.mxu0 0.0
  %111 = vmatpush1.msra.mxu0 0.0
  %112 = vmatprep.subr.mxu0 0.0
  %113 = vmatpush1.msra.mxu0 0.0
  %114 = vmatprep.subr.mxu0 0.0
  %115 = vmatpush1.msra.mxu0 0.0
  %116 = vmatprep.subr.mxu0 0.0
  %117 = vmatpush1.msra.mxu0 0.0
  %118 = vmatprep.subr.mxu0 0.0
  %119 = vmatpush1.msra.mxu0 0.0
  %120 = vmatprep.subr.mxu0 0.0
  %121 = vmatpush1.msra.mxu0 0.0
  %122 = vmatprep.subr.mxu0 0.0
  %123 = vmatpush1.msra.mxu0 0.0
  %124 = vmatprep.subr.mxu0 0.0
  %125 = vmatpush1.msra.mxu0 0.0
  %126 = vmatprep.subr.mxu0 0.0
  %127 = vmatpush1.msra.mxu0 0.0
  %128 = vmatprep.subr.mxu0 0.0
  %129 = vmatpush1.msra.mxu0 0.0
  %130 = vmatprep.subr.mxu0 0.0
  %131 = vmatpush1.msra.mxu0 0.0
  %132 = vmatprep.subr.mxu0 0.0
  %133 = vmatpush1.msra.mxu0 0.0
  %134 = vmatprep.subr.mxu0 0.0
  %135 = vmatpush1.msra.mxu0 0.0
  %136 = vmatprep.subr.mxu0 0.0
  %137 = vmatpush1.msra.mxu0 0.0
  %138 = vmatprep.subr.mxu0 0.0
  %139 = vmatpush1.msra.mxu0 0.0
  %140 = vmatprep.subr.mxu0 0.0
  %141 = vmatpush1.msra.mxu0 0.0
  %142 = vmatprep.subr.mxu0 0.0
  %143 = vmatpush1.msra.mxu0 0.0
  %144 = vmatprep.subr.mxu0 0.0
  %145 = vmatpush1.msra.mxu0 0.0
  %146 = vmatprep.mubr.f32.mxu0 0.0
  %147 = vmatmul.mubr.f32.gmra.mrb[0].mxu0 %v71
  %v148 = vpop.f32.mrb[0].mxu0
  %v149 = vadd.f32 %v52, %v148
  %v150 = vpop.f32.mrb[0].mxu0
  %v151 = vadd.f32 %v52, %v150
  %152 = vmatprep.mubr.f32.mxu0 0.0
  %153 = vmatmul.mubr.f32.gmra.mrb[0].mxu0 %v74
  %v154 = vpop.f32.mrb[0].mxu0
  %v155 = vadd.f32 %v57, %v154
  %v156 = vpop.f32.mrb[0].mxu0
  %v157 = vadd.f32 %v57, %v156
  %158 = vmatprep.mubr.f32.mxu0 0.0
  %159 = vmatmul.mubr.f32.gmra.mrb[0].mxu0 %v77
  %v160 = vpop.f32.mrb[0].mxu0
  %v161 = vadd.f32 %v62, %v160
  %v162 = vpop.f32.mrb[0].mxu0
  %v163 = vadd.f32 %v62, %v162
  %164 = vmatprep.mubr.f32.mxu0 0.0
  %165 = vmatmul.mubr.f32.gmra.mrb[0].mxu0 %v80
  %v166 = vpop.f32.mrb[0].mxu0
  %v167 = vadd.f32 %v67, %v166
  %v168 = vpop.f32.mrb[0].mxu0
  %v169 = vadd.f32 %v67, %v168
  %170 = vdwg.mxu0
  %171 = vmatprep.subr.mxu0 0.0
  %172 = vmatpush1.msra.mxu0 %v28
  %173 = vmatprep.subr.mxu0 0.0
  %174 = vmatpush1.msra.mxu0 %v31
  %175 = vmatprep.subr.mxu0 0.0
  %176 = vmatpush1.msra.mxu0 %v34
  %177 = vmatprep.subr.mxu0 0.0
  %178 = vmatpush1.msra.mxu0 %v37
  %179 = vmatprep.subr.mxu0 0.0
  %180 = vmatpush1.msra.mxu0 %v40
  %181 = vmatprep.subr.mxu0 0.0
  %182 = vmatpush1.msra.mxu0 0.0
  %183 = vmatprep.subr.mxu0 0.0
  %184 = vmatpush1.msra.mxu0 0.0
  %185 = vmatprep.subr.mxu0 0.0
  %186 = vmatpush1.msra.mxu0 0.0
  %187 = vmatprep.subr.mxu0 0.0
  %188 = vmatpush1.msra.mxu0 0.0
  %189 = vmatprep.subr.mxu0 0.0
  %190 = vmatpush1.msra.mxu0 0.0
  %191 = vmatprep.subr.mxu0 0.0
  %192 = vmatpush1.msra.mxu0 0.0
  %193 = vmatprep.subr.mxu0 0.0
  %194 = vmatpush1.msra.mxu0 0.0
  %195 = vmatprep.subr.mxu0 0.0
  %196 = vmatpush1.msra.mxu0 0.0
  %197 = vmatprep.subr.mxu0 0.0
  %198 = vmatpush1.msra.mxu0 0.0
  %199 = vmatprep.subr.mxu0 0.0
  %200 = vmatpush1.msra.mxu0 0.0
  %201 = vmatprep.subr.mxu0 0.0
  %202 = vmatpush1.msra.mxu0 0.0
  %203 = vmatprep.subr.mxu0 0.0
  %204 = vmatpush1.msra.mxu0 0.0
  %205 = vmatprep.subr.mxu0 0.0
  %206 = vmatpush1.msra.mxu0 0.0
  %207 = vmatprep.subr.mxu0 0.0
  %208 = vmatpush1.msra.mxu0 0.0
  %209 = vmatprep.subr.mxu0 0.0
  %210 = vmatpush1.msra.mxu0 0.0
  %211 = vmatprep.subr.mxu0 0.0
  %212 = vmatpush1.msra.mxu0 0.0
  %213 = vmatprep.subr.mxu0 0.0
  %214 = vmatpush1.msra.mxu0 0.0
  %215 = vmatprep.subr.mxu0 0.0
  %216 = vmatpush1.msra.mxu0 0.0
  %217 = vmatprep.subr.mxu0 0.0
  %218 = vmatpush1.msra.mxu0 0.0
  %219 = vmatprep.subr.mxu0 0.0
  %220 = vmatpush1.msra.mxu0 0.0
  %221 = vmatprep.subr.mxu0 0.0
  %222 = vmatpush1.msra.mxu0 0.0
  %223 = vmatprep.subr.mxu0 0.0
  %224 = vmatpush1.msra.mxu0 0.0
  %225 = vmatprep.subr.mxu0 0.0
  %226 = vmatpush1.msra.mxu0 0.0
  %227 = vmatprep.subr.mxu0 0.0
  %228 = vmatpush1.msra.mxu0 0.0
  %229 = vmatprep.subr.mxu0 0.0
  %230 = vmatpush1.msra.mxu0 0.0
  %231 = vmatprep.subr.mxu0 0.0
  %232 = vmatpush1.msra.mxu0 0.0
  %233 = vmatprep.subr.mxu0 0.0
  %234 = vmatpush1.msra.mxu0 0.0
  %235 = vmatprep.mubr.f32.mxu0 0.0
  %236 = vmatmul.mubr.f32.gmra.mrb[0].mxu0 %v71
  %v237 = vpop.f32.mrb[0].mxu0
  %v238 = vadd.f32 %v52, %v237
  %v239 = vpop.f32.mrb[0].mxu0
  %240 = vmatprep.mubr.f32.mxu0 0.0
  %241 = vmatmul.mubr.f32.gmra.mrb[0].mxu0 %v74
  %v242 = vpop.f32.mrb[0].mxu0
  %v243 = vadd.f32 %v57, %v242
  %v244 = vpop.f32.mrb[0].mxu0
  %245 = vmatprep.mubr.f32.mxu0 0.0
  %246 = vmatmul.mubr.f32.gmra.mrb[0].mxu0 %v77
  %v247 = vpop.f32.mrb[0].mxu0
  %v248 = vadd.f32 %v62, %v247
  %v249 = vpop.f32.mrb[0].mxu0
  %250 = vmatprep.mubr.f32.mxu0 0.0
  %251 = vmatmul.mubr.f32.gmra.mrb[0].mxu0 %v80
  %v252 = vpop.f32.mrb[0].mxu0
  %v253 = vadd.f32 %v67, %v252
  %v254 = vpop.f32.mrb[0].mxu0
  %255 = vdwg.mxu0
  %v256 = vmax.f32 %v149, 0.0
  %v257 = vmax.f32 %v151, 0.0
  %v258 = vmax.f32 %v238, 0.0
  %v259 = vmax.f32 %v155, 0.0
  %v260 = vmax.f32 %v157, 0.0
  %v261 = vmax.f32 %v243, 0.0
  %v262 = vmax.f32 %v161, 0.0
  %v263 = vmax.f32 %v163, 0.0
  %v264 = vmax.f32 %v248, 0.0
  %v265 = vmax.f32 %v167, 0.0
  %v266 = vmax.f32 %v169, 0.0
  %v267 = vmax.f32 %v253, 0.0
  %v268 = vld [vmem:[%s5] sm:$0xff]
  %v269 = vld [vmem:[%s5 + $0x8] sm:$0xff]
  %v270 = vld [vmem:[%s5 + $0x10] sm:$0xff]
  %v271 = vld [vmem:[%s5 + $0x18] sm:$0xff]
  %v272 = vld [vmem:[%s5 + $0x20] sm:$0xff]
  %v273 = vld [vmem:[%s5 + $0x28] sm:$0xff]
  %v274 = vld [vmem:[%s5 + $0x30] sm:$0xff]
  %v275 = vld [vmem:[%s5 + $0x38] sm:$0xff]
  %v276 = vld [vmem:[%s5 + $0x40] sm:$0xff]
  %v277 = vld [vmem:[%s5 + $0x48] sm:$0xff]
  %v278 = vld [vmem:[%s5 + $0x50] sm:$0xff]
  %v279 = vld [vmem:[%s5 + $0x58] sm:$0xff]
  %v280 = vld [vmem:[%s5 + $0x60] sm:$0xff]
  %v281 = vld [vmem:[%s5 + $0x68] sm:$0xff]
  %v282 = vld [vmem:[%s5 + $0x70] sm:$0xff]
  %v283 = vld [vmem:[%s5 + $0x78] sm:$0xff]
  %v284 = vld [vmem:[%s5 + $0x80] sm:$0xff]
  %v285 = vld [vmem:[%s5 + $0x88] sm:$0xff]
  %v286 = vld [vmem:[%s5 + $0x90] sm:$0xff]
  %v287 = vld [vmem:[%s5 + $0x98] sm:$0xff]
  %v288 = vld [vmem:[%s5 + $0xa0] sm:$0xff]
  %v289 = vld [vmem:[%s5 + $0xa8] sm:$0xff]
  %v290 = vld [vmem:[%s5 + $0xb0] sm:$0xff]
  %v291 = vld [vmem:[%s5 + $0xb8] sm:$0xff]
  %v292 = vld [vmem:[%s5 + $0xc0] sm:$0xff]
  %v293 = vld [vmem:[%s5 + $0xc8] sm:$0xff]
  %v294 = vld [vmem:[%s5 + $0xd0] sm:$0xff]
  %v295 = vld [vmem:[%s5 + $0xd8] sm:$0xff]
  %v296 = vld [vmem:[%s5 + $0xe0] sm:$0xff]
  %v297 = vld [vmem:[%s5 + $0xe8] sm:$0xff]
  %v298 = vld [vmem:[%s5 + $0xf0] sm:$0xff]
  %v299 = vld [vmem:[%s5 + $0xf8] sm:$0xff]
  %v300 = vld [vmem:[%s5 + $0x100] sm:$0xff]
  %v301 = vld [vmem:[%s5 + $0x108] sm:$0xff]
  %v302 = vld [vmem:[%s5 + $0x110] sm:$0xff]
  %v303 = vld [vmem:[%s5 + $0x118] sm:$0xff]
  %vm304 = vcmask 261120
  %v306 = vsel %vm304, %v258, 0
  %v309 = vsel %vm304, %v261, 0
  %v312 = vsel %vm304, %v264, 0
  %v315 = vsel %vm304, %v267, 0
  %317 = vmatprep.subr.mxu0 0.0
  %318 = vmatpush1.msra.mxu0 %v268
  %319 = vmatprep.subr.mxu0 0.0
  %320 = vmatpush1.msra.mxu0 %v269
  %321 = vmatprep.subr.mxu0 0.0
  %322 = vmatpush1.msra.mxu0 %v270
  %323 = vmatprep.subr.mxu0 0.0
  %324 = vmatpush1.msra.mxu0 %v271
  %325 = vmatprep.subr.mxu0 0.0
  %326 = vmatpush1.msra.mxu0 %v272
  %327 = vmatprep.subr.mxu0 0.0
  %328 = vmatpush1.msra.mxu0 %v273
  %329 = vmatprep.subr.mxu0 0.0
  %330 = vmatpush1.msra.mxu0 %v274
  %331 = vmatprep.subr.mxu0 0.0
  %332 = vmatpush1.msra.mxu0 %v275
  %333 = vmatprep.subr.mxu0 0.0
  %334 = vmatpush1.msra.mxu0 %v276
  %335 = vmatprep.subr.mxu0 0.0
  %336 = vmatpush1.msra.mxu0 %v277
  %337 = vmatprep.subr.mxu0 0.0
  %338 = vmatpush1.msra.mxu0 %v278
  %339 = vmatprep.subr.mxu0 0.0
  %340 = vmatpush1.msra.mxu0 %v279
  %341 = vmatprep.subr.mxu0 0.0
  %342 = vmatpush1.msra.mxu0 %v280
  %343 = vmatprep.subr.mxu0 0.0
  %344 = vmatpush1.msra.mxu0 %v281
  %345 = vmatprep.subr.mxu0 0.0
  %346 = vmatpush1.msra.mxu0 %v282
  %347 = vmatprep.subr.mxu0 0.0
  %348 = vmatpush1.msra.mxu0 %v283
  %349 = vmatprep.subr.mxu0 0.0
  %350 = vmatpush1.msra.mxu0 %v284
  %351 = vmatprep.subr.mxu0 0.0
  %352 = vmatpush1.msra.mxu0 %v285
  %353 = vmatprep.subr.mxu0 0.0
  %354 = vmatpush1.msra.mxu0 %v286
  %355 = vmatprep.subr.mxu0 0.0
  %356 = vmatpush1.msra.mxu0 %v287
  %357 = vmatprep.subr.mxu0 0.0
  %358 = vmatpush1.msra.mxu0 %v288
  %359 = vmatprep.subr.mxu0 0.0
  %360 = vmatpush1.msra.mxu0 %v289
  %361 = vmatprep.subr.mxu0 0.0
  %362 = vmatpush1.msra.mxu0 %v290
  %363 = vmatprep.subr.mxu0 0.0
  %364 = vmatpush1.msra.mxu0 %v291
  %365 = vmatprep.subr.mxu0 0.0
  %366 = vmatpush1.msra.mxu0 %v292
  %367 = vmatprep.subr.mxu0 0.0
  %368 = vmatpush1.msra.mxu0 %v293
  %369 = vmatprep.subr.mxu0 0.0
  %370 = vmatpush1.msra.mxu0 %v294
  %371 = vmatprep.subr.mxu0 0.0
  %372 = vmatpush1.msra.mxu0 %v295
  %373 = vmatprep.subr.mxu0 0.0
  %374 = vmatpush1.msra.mxu0 %v296
  %375 = vmatprep.subr.mxu0 0.0
  %376 = vmatpush1.msra.mxu0 %v297
  %377 = vmatprep.subr.mxu0 0.0
  %378 = vmatpush1.msra.mxu0 %v298
  %379 = vmatprep.subr.mxu0 0.0
  %380 = vmatpush1.msra.mxu0 %v299
  %381 = vmatprep.mubr.f32.mxu0 %v257
  %382 = vmatmul.mubr.f32.gmra.mrb[0].mxu0 %v256
  %v383 = vpop.f32.mrb[0].mxu0
  %v384 = vadd.f32 0.0, %v383
  %v385 = vpop.f32.mrb[0].mxu0
  %386 = vmatprep.mubr.f32.mxu0 %v260
  %387 = vmatmul.mubr.f32.gmra.mrb[0].mxu0 %v259
  %v388 = vpop.f32.mrb[0].mxu0
  %v389 = vadd.f32 0.0, %v388
  %v390 = vpop.f32.mrb[0].mxu0
  %391 = vmatprep.mubr.f32.mxu0 %v263
  %392 = vmatmul.mubr.f32.gmra.mrb[0].mxu0 %v262
  %v393 = vpop.f32.mrb[0].mxu0
  %v394 = vadd.f32 0.0, %v393
  %v395 = vpop.f32.mrb[0].mxu0
  %396 = vmatprep.mubr.f32.mxu0 %v266
  %397 = vmatmul.mubr.f32.gmra.mrb[0].mxu0 %v265
  %v398 = vpop.f32.mrb[0].mxu0
  %v399 = vadd.f32 0.0, %v398
  %v400 = vpop.f32.mrb[0].mxu0
  %401 = vdwg.mxu0
  %402 = vmatprep.subr.mxu0 0.0
  %403 = vmatpush1.msra.mxu0 %v300
  %404 = vmatprep.subr.mxu0 0.0
  %405 = vmatpush1.msra.mxu0 %v301
  %406 = vmatprep.subr.mxu0 0.0
  %407 = vmatpush1.msra.mxu0 %v302
  %408 = vmatprep.subr.mxu0 0.0
  %409 = vmatpush1.msra.mxu0 %v303
  %410 = vmatprep.subr.mxu0 0.0
  %411 = vmatpush1.msra.mxu0 0.0
  %412 = vmatprep.subr.mxu0 0.0
  %413 = vmatpush1.msra.mxu0 0.0
  %414 = vmatprep.subr.mxu0 0.0
  %415 = vmatpush1.msra.mxu0 0.0
  %416 = vmatprep.subr.mxu0 0.0
  %417 = vmatpush1.msra.mxu0 0.0
  %418 = vmatprep.subr.mxu0 0.0
  %419 = vmatpush1.msra.mxu0 0.0
  %420 = vmatprep.subr.mxu0 0.0
  %421 = vmatpush1.msra.mxu0 0.0
  %422 = vmatprep.subr.mxu0 0.0
  %423 = vmatpush1.msra.mxu0 0.0
  %424 = vmatprep.subr.mxu0 0.0
  %425 = vmatpush1.msra.mxu0 0.0
  %426 = vmatprep.subr.mxu0 0.0
  %427 = vmatpush1.msra.mxu0 0.0
  %428 = vmatprep.subr.mxu0 0.0
  %429 = vmatpush1.msra.mxu0 0.0
  %430 = vmatprep.subr.mxu0 0.0
  %431 = vmatpush1.msra.mxu0 0.0
  %432 = vmatprep.subr.mxu0 0.0
  %433 = vmatpush1.msra.mxu0 0.0
  %434 = vmatprep.subr.mxu0 0.0
  %435 = vmatpush1.msra.mxu0 0.0
  %436 = vmatprep.subr.mxu0 0.0
  %437 = vmatpush1.msra.mxu0 0.0
  %438 = vmatprep.subr.mxu0 0.0
  %439 = vmatpush1.msra.mxu0 0.0
  %440 = vmatprep.subr.mxu0 0.0
  %441 = vmatpush1.msra.mxu0 0.0
  %442 = vmatprep.subr.mxu0 0.0
  %443 = vmatpush1.msra.mxu0 0.0
  %444 = vmatprep.subr.mxu0 0.0
  %445 = vmatpush1.msra.mxu0 0.0
  %446 = vmatprep.subr.mxu0 0.0
  %447 = vmatpush1.msra.mxu0 0.0
  %448 = vmatprep.subr.mxu0 0.0
  %449 = vmatpush1.msra.mxu0 0.0
  %450 = vmatprep.subr.mxu0 0.0
  %451 = vmatpush1.msra.mxu0 0.0
  %452 = vmatprep.subr.mxu0 0.0
  %453 = vmatpush1.msra.mxu0 0.0
  %454 = vmatprep.subr.mxu0 0.0
  %455 = vmatpush1.msra.mxu0 0.0
  %456 = vmatprep.subr.mxu0 0.0
  %457 = vmatpush1.msra.mxu0 0.0
  %458 = vmatprep.subr.mxu0 0.0
  %459 = vmatpush1.msra.mxu0 0.0
  %460 = vmatprep.subr.mxu0 0.0
  %461 = vmatpush1.msra.mxu0 0.0
  %462 = vmatprep.subr.mxu0 0.0
  %463 = vmatpush1.msra.mxu0 0.0
  %464 = vmatprep.subr.mxu0 0.0
  %465 = vmatpush1.msra.mxu0 0.0
  %466 = vmatprep.mubr.f32.mxu0 0.0
  %467 = vmatmul.mubr.f32.gmra.mrb[0].mxu0 %v306
  %v468 = vpop.f32.mrb[0].mxu0
  %v469 = vadd.f32 %v384, %v468
  %v470 = vpop.f32.mrb[0].mxu0
  %471 = vmatprep.mubr.f32.mxu0 0.0
  %472 = vmatmul.mubr.f32.gmra.mrb[0].mxu0 %v309
  %v473 = vpop.f32.mrb[0].mxu0
  %v474 = vadd.f32 %v389, %v473
  %v475 = vpop.f32.mrb[0].mxu0
  %476 = vmatprep.mubr.f32.mxu0 0.0
  %477 = vmatmul.mubr.f32.gmra.mrb[0].mxu0 %v312
  %v478 = vpop.f32.mrb[0].mxu0
  %v479 = vadd.f32 %v394, %v478
  %v480 = vpop.f32.mrb[0].mxu0
  %481 = vmatprep.mubr.f32.mxu0 0.0
  %482 = vmatmul.mubr.f32.gmra.mrb[0].mxu0 %v315
  %v483 = vpop.f32.mrb[0].mxu0
  %v484 = vadd.f32 %v399, %v483
  %v485 = vpop.f32.mrb[0].mxu0
  %486 = vdwg.mxu0
  %v487 = vld [vmem:[%s3] sm:$0x3]
  %v488 = vlaneseq
  %v489 = vshrl.u32 %v488, 7
  %v490 = vsub.s32 0, %v489
  %v491 = vrot.slane %v487, %v490
  %493 = vbcast.lane.b32.xlu0 %v491, 256
  %v494 = vpop.permute.xlu0 %493
  %s496 = sor.u32 256, 8
  %497 = vbcast.lane.b32.xlu0 %v491, %s496
  %v498 = vpop.permute.xlu0 %497
  %s500 = sor.u32 256, 16
  %501 = vbcast.lane.b32.xlu0 %v491, %s500
  %v502 = vpop.permute.xlu0 %501
  %s504 = sor.u32 256, 24
  %505 = vbcast.lane.b32.xlu0 %v491, %s504
  %v506 = vpop.permute.xlu0 %505
  %v507 = vlaneseq
  %v508 = vshrl.u32 %v507, 7
  %v509 = vsub.s32 1, %v508
  %v510 = vrot.slane %v487, %v509
  %512 = vbcast.lane.b32.xlu0 %v510, 256
  %v513 = vpop.permute.xlu0 %512
  %s515 = sor.u32 256, 8
  %516 = vbcast.lane.b32.xlu0 %v510, %s515
  %v517 = vpop.permute.xlu0 %516
  %s519 = sor.u32 256, 16
  %520 = vbcast.lane.b32.xlu0 %v510, %s519
  %v521 = vpop.permute.xlu0 %520
  %s523 = sor.u32 256, 24
  %524 = vbcast.lane.b32.xlu0 %v510, %s523
  %v525 = vpop.permute.xlu0 %524
  %v526 = vmul.f32 %v494, %v469
  %v527 = vmul.f32 %v498, %v474
  %v528 = vmul.f32 %v502, %v479
  %v529 = vmul.f32 %v506, %v484
  %v530 = vmul.f32 %v513, %v469
  %v531 = vmul.f32 %v517, %v474
  %v532 = vmul.f32 %v521, %v479
  %v533 = vmul.f32 %v525, %v484
  %vm534 = vcmask 15360
  %v535 = vsel %vm534, %v526, 0.0
  %v536 = vsel %vm534, %v527, 0.0
  %v537 = vadd.f32 %v535, %v536
  %v538 = vsel %vm534, %v528, 0.0
  %v539 = vadd.f32 %v537, %v538
  %v540 = vsel %vm534, %v529, 0.0
  %v541 = vadd.f32 %v539, %v540
  %v542 = vrot.slane %v541, 4
  %v543 = vadd.f32 %v541, %v542
  %v544 = vrot.slane %v543, 2
  %v545 = vadd.f32 %v543, %v544
  %v546 = vrot.slane %v545, 1
  %v547 = vadd.f32 %v545, %v546
  %v548 = vsel %vm534, %v530, 0.0
  %v549 = vsel %vm534, %v531, 0.0
  %v550 = vadd.f32 %v548, %v549
  %v551 = vsel %vm534, %v532, 0.0
  %v552 = vadd.f32 %v550, %v551
  %v553 = vsel %vm534, %v533, 0.0
  %v554 = vadd.f32 %v552, %v553
  %v555 = vrot.slane %v554, 4
  %v556 = vadd.f32 %v554, %v555
  %v557 = vrot.slane %v556, 2
  %v558 = vadd.f32 %v556, %v557
  %v559 = vrot.slane %v558, 1
  %v560 = vadd.f32 %v558, %v559
  %v561 = vmax.f32 %v547, 0.0
  %v562 = vmax.f32 %v560, 0.0
  %v563 = vld [vmem:[%s4] sm:$0xff]
  %v564 = vld [vmem:[%s4 + $0x8] sm:$0xff]
  %v565 = vld [vmem:[%s4 + $0x10] sm:$0xff]
  %v566 = vld [vmem:[%s4 + $0x18] sm:$0xff]
  %v567 = vlaneseq
  %v568 = vshrl.u32 %v567, 7
  %v569 = vsub.s32 0, %v568
  %v570 = vrot.slane %v563, %v569
  %572 = vbcast.lane.b32.xlu0 %v570, 256
  %v573 = vpop.permute.xlu0 %572
  %v574 = vlaneseq
  %v575 = vshrl.u32 %v574, 7
  %v576 = vsub.s32 1, %v575
  %v577 = vrot.slane %v563, %v576
  %579 = vbcast.lane.b32.xlu0 %v577, 256
  %v580 = vpop.permute.xlu0 %579
  %v581 = vlaneseq
  %v582 = vshrl.u32 %v581, 7
  %v583 = vsub.s32 2, %v582
  %v584 = vrot.slane %v563, %v583
  %586 = vbcast.lane.b32.xlu0 %v584, 256
  %v587 = vpop.permute.xlu0 %586
  %v588 = vlaneseq
  %v589 = vshrl.u32 %v588, 7
  %v590 = vsub.s32 3, %v589
  %v591 = vrot.slane %v563, %v590
  %593 = vbcast.lane.b32.xlu0 %v591, 256
  %v594 = vpop.permute.xlu0 %593
  %v595 = vlaneseq
  %v596 = vshrl.u32 %v595, 7
  %v597 = vsub.s32 4, %v596
  %v598 = vrot.slane %v563, %v597
  %600 = vbcast.lane.b32.xlu0 %v598, 256
  %v601 = vpop.permute.xlu0 %600
  %v602 = vlaneseq
  %v603 = vshrl.u32 %v602, 7
  %v604 = vsub.s32 5, %v603
  %v605 = vrot.slane %v563, %v604
  %607 = vbcast.lane.b32.xlu0 %v605, 256
  %v608 = vpop.permute.xlu0 %607
  %v609 = vlaneseq
  %v610 = vshrl.u32 %v609, 7
  %v611 = vsub.s32 6, %v610
  %v612 = vrot.slane %v563, %v611
  %614 = vbcast.lane.b32.xlu0 %v612, 256
  %v615 = vpop.permute.xlu0 %614
  %v616 = vlaneseq
  %v617 = vshrl.u32 %v616, 7
  %v618 = vsub.s32 7, %v617
  %v619 = vrot.slane %v563, %v618
  %621 = vbcast.lane.b32.xlu0 %v619, 256
  %v622 = vpop.permute.xlu0 %621
  %v623 = vlaneseq
  %v624 = vshrl.u32 %v623, 7
  %v625 = vsub.s32 0, %v624
  %v626 = vrot.slane %v564, %v625
  %628 = vbcast.lane.b32.xlu0 %v626, 256
  %v629 = vpop.permute.xlu0 %628
  %v630 = vlaneseq
  %v631 = vshrl.u32 %v630, 7
  %v632 = vsub.s32 1, %v631
  %v633 = vrot.slane %v564, %v632
  %635 = vbcast.lane.b32.xlu0 %v633, 256
  %v636 = vpop.permute.xlu0 %635
  %v637 = vlaneseq
  %v638 = vshrl.u32 %v637, 7
  %v639 = vsub.s32 2, %v638
  %v640 = vrot.slane %v564, %v639
  %642 = vbcast.lane.b32.xlu0 %v640, 256
  %v643 = vpop.permute.xlu0 %642
  %v644 = vlaneseq
  %v645 = vshrl.u32 %v644, 7
  %v646 = vsub.s32 3, %v645
  %v647 = vrot.slane %v564, %v646
  %649 = vbcast.lane.b32.xlu0 %v647, 256
  %v650 = vpop.permute.xlu0 %649
  %v651 = vlaneseq
  %v652 = vshrl.u32 %v651, 7
  %v653 = vsub.s32 4, %v652
  %v654 = vrot.slane %v564, %v653
  %656 = vbcast.lane.b32.xlu0 %v654, 256
  %v657 = vpop.permute.xlu0 %656
  %v658 = vlaneseq
  %v659 = vshrl.u32 %v658, 7
  %v660 = vsub.s32 5, %v659
  %v661 = vrot.slane %v564, %v660
  %663 = vbcast.lane.b32.xlu0 %v661, 256
  %v664 = vpop.permute.xlu0 %663
  %v665 = vlaneseq
  %v666 = vshrl.u32 %v665, 7
  %v667 = vsub.s32 6, %v666
  %v668 = vrot.slane %v564, %v667
  %670 = vbcast.lane.b32.xlu0 %v668, 256
  %v671 = vpop.permute.xlu0 %670
  %v672 = vlaneseq
  %v673 = vshrl.u32 %v672, 7
  %v674 = vsub.s32 7, %v673
  %v675 = vrot.slane %v564, %v674
  %677 = vbcast.lane.b32.xlu0 %v675, 256
  %v678 = vpop.permute.xlu0 %677
  %v679 = vlaneseq
  %v680 = vshrl.u32 %v679, 7
  %v681 = vsub.s32 0, %v680
  %v682 = vrot.slane %v565, %v681
  %684 = vbcast.lane.b32.xlu0 %v682, 256
  %v685 = vpop.permute.xlu0 %684
  %v686 = vlaneseq
  %v687 = vshrl.u32 %v686, 7
  %v688 = vsub.s32 1, %v687
  %v689 = vrot.slane %v565, %v688
  %691 = vbcast.lane.b32.xlu0 %v689, 256
  %v692 = vpop.permute.xlu0 %691
  %v693 = vlaneseq
  %v694 = vshrl.u32 %v693, 7
  %v695 = vsub.s32 2, %v694
  %v696 = vrot.slane %v565, %v695
  %698 = vbcast.lane.b32.xlu0 %v696, 256
  %v699 = vpop.permute.xlu0 %698
  %v700 = vlaneseq
  %v701 = vshrl.u32 %v700, 7
  %v702 = vsub.s32 3, %v701
  %v703 = vrot.slane %v565, %v702
  %705 = vbcast.lane.b32.xlu0 %v703, 256
  %v706 = vpop.permute.xlu0 %705
  %v707 = vlaneseq
  %v708 = vshrl.u32 %v707, 7
  %v709 = vsub.s32 4, %v708
  %v710 = vrot.slane %v565, %v709
  %712 = vbcast.lane.b32.xlu0 %v710, 256
  %v713 = vpop.permute.xlu0 %712
  %v714 = vlaneseq
  %v715 = vshrl.u32 %v714, 7
  %v716 = vsub.s32 5, %v715
  %v717 = vrot.slane %v565, %v716
  %719 = vbcast.lane.b32.xlu0 %v717, 256
  %v720 = vpop.permute.xlu0 %719
  %v721 = vlaneseq
  %v722 = vshrl.u32 %v721, 7
  %v723 = vsub.s32 6, %v722
  %v724 = vrot.slane %v565, %v723
  %726 = vbcast.lane.b32.xlu0 %v724, 256
  %v727 = vpop.permute.xlu0 %726
  %v728 = vlaneseq
  %v729 = vshrl.u32 %v728, 7
  %v730 = vsub.s32 7, %v729
  %v731 = vrot.slane %v565, %v730
  %733 = vbcast.lane.b32.xlu0 %v731, 256
  %v734 = vpop.permute.xlu0 %733
  %v735 = vlaneseq
  %v736 = vshrl.u32 %v735, 7
  %v737 = vsub.s32 0, %v736
  %v738 = vrot.slane %v566, %v737
  %740 = vbcast.lane.b32.xlu0 %v738, 256
  %v741 = vpop.permute.xlu0 %740
  %v742 = vlaneseq
  %v743 = vshrl.u32 %v742, 7
  %v744 = vsub.s32 1, %v743
  %v745 = vrot.slane %v566, %v744
  %747 = vbcast.lane.b32.xlu0 %v745, 256
  %v748 = vpop.permute.xlu0 %747
  %v749 = vlaneseq
  %v750 = vshrl.u32 %v749, 7
  %v751 = vsub.s32 2, %v750
  %v752 = vrot.slane %v566, %v751
  %754 = vbcast.lane.b32.xlu0 %v752, 256
  %v755 = vpop.permute.xlu0 %754
  %v756 = vlaneseq
  %v757 = vshrl.u32 %v756, 7
  %v758 = vsub.s32 3, %v757
  %v759 = vrot.slane %v566, %v758
  %761 = vbcast.lane.b32.xlu0 %v759, 256
  %v762 = vpop.permute.xlu0 %761
  %v763 = vlaneseq
  %v764 = vshrl.u32 %v763, 7
  %v765 = vsub.s32 4, %v764
  %v766 = vrot.slane %v566, %v765
  %768 = vbcast.lane.b32.xlu0 %v766, 256
  %v769 = vpop.permute.xlu0 %768
  %v770 = vlaneseq
  %v771 = vshrl.u32 %v770, 7
  %v772 = vsub.s32 5, %v771
  %v773 = vrot.slane %v566, %v772
  %775 = vbcast.lane.b32.xlu0 %v773, 256
  %v776 = vpop.permute.xlu0 %775
  %v777 = vlaneseq
  %v778 = vshrl.u32 %v777, 7
  %v779 = vsub.s32 6, %v778
  %v780 = vrot.slane %v566, %v779
  %782 = vbcast.lane.b32.xlu0 %v780, 256
  %v783 = vpop.permute.xlu0 %782
  %v784 = vlaneseq
  %v785 = vshrl.u32 %v784, 7
  %v786 = vsub.s32 7, %v785
  %v787 = vrot.slane %v566, %v786
  %789 = vbcast.lane.b32.xlu0 %v787, 256
  %v790 = vpop.permute.xlu0 %789
  %vm793 = vcmask 1041409
  %v794 = vsel %vm793, %v562, %v561
  %v796 = vmul.f32 %v573, %v794
  %v797 = vmul.f32 %v580, %v794
  %v798 = vmul.f32 %v587, %v794
  %v799 = vmul.f32 %v594, %v794
  %v800 = vmul.f32 %v601, %v794
  %v801 = vmul.f32 %v608, %v794
  %v802 = vmul.f32 %v615, %v794
  %v803 = vmul.f32 %v622, %v794
  %v804 = vmul.f32 %v629, %v794
  %v805 = vmul.f32 %v636, %v794
  %v806 = vmul.f32 %v643, %v794
  %v807 = vmul.f32 %v650, %v794
  %v808 = vmul.f32 %v657, %v794
  %v809 = vmul.f32 %v664, %v794
  %v810 = vmul.f32 %v671, %v794
  %v811 = vmul.f32 %v678, %v794
  %v812 = vmul.f32 %v685, %v794
  %v813 = vmul.f32 %v692, %v794
  %v814 = vmul.f32 %v699, %v794
  %v815 = vmul.f32 %v706, %v794
  %v816 = vmul.f32 %v713, %v794
  %v817 = vmul.f32 %v720, %v794
  %v818 = vmul.f32 %v727, %v794
  %v819 = vmul.f32 %v734, %v794
  %v820 = vmul.f32 %v741, %v794
  %v821 = vmul.f32 %v748, %v794
  %v822 = vmul.f32 %v755, %v794
  %v823 = vmul.f32 %v762, %v794
  %v824 = vmul.f32 %v769, %v794
  %v825 = vmul.f32 %v776, %v794
  %v826 = vmul.f32 %v783, %v794
  %v827 = vmul.f32 %v790, %v794
  %vm828 = vcmask 9216
  %v829 = vsel %vm828, %v796, 0.0
  %v830 = vrot.slane %v829, 4
  %v831 = vadd.f32 %v829, %v830
  %v832 = vrot.slane %v831, 2
  %v833 = vadd.f32 %v831, %v832
  %v834 = vrot.slane %v833, 1
  %v835 = vadd.f32 %v833, %v834
  %v836 = vsel %vm828, %v797, 0.0
  %v837 = vrot.slane %v836, 4
  %v838 = vadd.f32 %v836, %v837
  %v839 = vrot.slane %v838, 2
  %v840 = vadd.f32 %v838, %v839
  %v841 = vrot.slane %v840, 1
  %v842 = vadd.f32 %v840, %v841
  %v843 = vsel %vm828, %v798, 0.0
  %v844 = vrot.slane %v843, 4
  %v845 = vadd.f32 %v843, %v844
  %v846 = vrot.slane %v845, 2
  %v847 = vadd.f32 %v845, %v846
  %v848 = vrot.slane %v847, 1
  %v849 = vadd.f32 %v847, %v848
  %v850 = vsel %vm828, %v799, 0.0
  %v851 = vrot.slane %v850, 4
  %v852 = vadd.f32 %v850, %v851
  %v853 = vrot.slane %v852, 2
  %v854 = vadd.f32 %v852, %v853
  %v855 = vrot.slane %v854, 1
  %v856 = vadd.f32 %v854, %v855
  %v857 = vsel %vm828, %v800, 0.0
  %v858 = vrot.slane %v857, 4
  %v859 = vadd.f32 %v857, %v858
  %v860 = vrot.slane %v859, 2
  %v861 = vadd.f32 %v859, %v860
  %v862 = vrot.slane %v861, 1
  %v863 = vadd.f32 %v861, %v862
  %v864 = vsel %vm828, %v801, 0.0
  %v865 = vrot.slane %v864, 4
  %v866 = vadd.f32 %v864, %v865
  %v867 = vrot.slane %v866, 2
  %v868 = vadd.f32 %v866, %v867
  %v869 = vrot.slane %v868, 1
  %v870 = vadd.f32 %v868, %v869
  %v871 = vsel %vm828, %v802, 0.0
  %v872 = vrot.slane %v871, 4
  %v873 = vadd.f32 %v871, %v872
  %v874 = vrot.slane %v873, 2
  %v875 = vadd.f32 %v873, %v874
  %v876 = vrot.slane %v875, 1
  %v877 = vadd.f32 %v875, %v876
  %v878 = vsel %vm828, %v803, 0.0
  %v879 = vrot.slane %v878, 4
  %v880 = vadd.f32 %v878, %v879
  %v881 = vrot.slane %v880, 2
  %v882 = vadd.f32 %v880, %v881
  %v883 = vrot.slane %v882, 1
  %v884 = vadd.f32 %v882, %v883
  %v885 = vsel %vm828, %v804, 0.0
  %v886 = vrot.slane %v885, 4
  %v887 = vadd.f32 %v885, %v886
  %v888 = vrot.slane %v887, 2
  %v889 = vadd.f32 %v887, %v888
  %v890 = vrot.slane %v889, 1
  %v891 = vadd.f32 %v889, %v890
  %v892 = vsel %vm828, %v805, 0.0
  %v893 = vrot.slane %v892, 4
  %v894 = vadd.f32 %v892, %v893
  %v895 = vrot.slane %v894, 2
  %v896 = vadd.f32 %v894, %v895
  %v897 = vrot.slane %v896, 1
  %v898 = vadd.f32 %v896, %v897
  %v899 = vsel %vm828, %v806, 0.0
  %v900 = vrot.slane %v899, 4
  %v901 = vadd.f32 %v899, %v900
  %v902 = vrot.slane %v901, 2
  %v903 = vadd.f32 %v901, %v902
  %v904 = vrot.slane %v903, 1
  %v905 = vadd.f32 %v903, %v904
  %v906 = vsel %vm828, %v807, 0.0
  %v907 = vrot.slane %v906, 4
  %v908 = vadd.f32 %v906, %v907
  %v909 = vrot.slane %v908, 2
  %v910 = vadd.f32 %v908, %v909
  %v911 = vrot.slane %v910, 1
  %v912 = vadd.f32 %v910, %v911
  %v913 = vsel %vm828, %v808, 0.0
  %v914 = vrot.slane %v913, 4
  %v915 = vadd.f32 %v913, %v914
  %v916 = vrot.slane %v915, 2
  %v917 = vadd.f32 %v915, %v916
  %v918 = vrot.slane %v917, 1
  %v919 = vadd.f32 %v917, %v918
  %v920 = vsel %vm828, %v809, 0.0
  %v921 = vrot.slane %v920, 4
  %v922 = vadd.f32 %v920, %v921
  %v923 = vrot.slane %v922, 2
  %v924 = vadd.f32 %v922, %v923
  %v925 = vrot.slane %v924, 1
  %v926 = vadd.f32 %v924, %v925
  %v927 = vsel %vm828, %v810, 0.0
  %v928 = vrot.slane %v927, 4
  %v929 = vadd.f32 %v927, %v928
  %v930 = vrot.slane %v929, 2
  %v931 = vadd.f32 %v929, %v930
  %v932 = vrot.slane %v931, 1
  %v933 = vadd.f32 %v931, %v932
  %v934 = vsel %vm828, %v811, 0.0
  %v935 = vrot.slane %v934, 4
  %v936 = vadd.f32 %v934, %v935
  %v937 = vrot.slane %v936, 2
  %v938 = vadd.f32 %v936, %v937
  %v939 = vrot.slane %v938, 1
  %v940 = vadd.f32 %v938, %v939
  %v941 = vsel %vm828, %v812, 0.0
  %v942 = vrot.slane %v941, 4
  %v943 = vadd.f32 %v941, %v942
  %v944 = vrot.slane %v943, 2
  %v945 = vadd.f32 %v943, %v944
  %v946 = vrot.slane %v945, 1
  %v947 = vadd.f32 %v945, %v946
  %v948 = vsel %vm828, %v813, 0.0
  %v949 = vrot.slane %v948, 4
  %v950 = vadd.f32 %v948, %v949
  %v951 = vrot.slane %v950, 2
  %v952 = vadd.f32 %v950, %v951
  %v953 = vrot.slane %v952, 1
  %v954 = vadd.f32 %v952, %v953
  %v955 = vsel %vm828, %v814, 0.0
  %v956 = vrot.slane %v955, 4
  %v957 = vadd.f32 %v955, %v956
  %v958 = vrot.slane %v957, 2
  %v959 = vadd.f32 %v957, %v958
  %v960 = vrot.slane %v959, 1
  %v961 = vadd.f32 %v959, %v960
  %v962 = vsel %vm828, %v815, 0.0
  %v963 = vrot.slane %v962, 4
  %v964 = vadd.f32 %v962, %v963
  %v965 = vrot.slane %v964, 2
  %v966 = vadd.f32 %v964, %v965
  %v967 = vrot.slane %v966, 1
  %v968 = vadd.f32 %v966, %v967
  %v969 = vsel %vm828, %v816, 0.0
  %v970 = vrot.slane %v969, 4
  %v971 = vadd.f32 %v969, %v970
  %v972 = vrot.slane %v971, 2
  %v973 = vadd.f32 %v971, %v972
  %v974 = vrot.slane %v973, 1
  %v975 = vadd.f32 %v973, %v974
  %v976 = vsel %vm828, %v817, 0.0
  %v977 = vrot.slane %v976, 4
  %v978 = vadd.f32 %v976, %v977
  %v979 = vrot.slane %v978, 2
  %v980 = vadd.f32 %v978, %v979
  %v981 = vrot.slane %v980, 1
  %v982 = vadd.f32 %v980, %v981
  %v983 = vsel %vm828, %v818, 0.0
  %v984 = vrot.slane %v983, 4
  %v985 = vadd.f32 %v983, %v984
  %v986 = vrot.slane %v985, 2
  %v987 = vadd.f32 %v985, %v986
  %v988 = vrot.slane %v987, 1
  %v989 = vadd.f32 %v987, %v988
  %v990 = vsel %vm828, %v819, 0.0
  %v991 = vrot.slane %v990, 4
  %v992 = vadd.f32 %v990, %v991
  %v993 = vrot.slane %v992, 2
  %v994 = vadd.f32 %v992, %v993
  %v995 = vrot.slane %v994, 1
  %v996 = vadd.f32 %v994, %v995
  %v997 = vsel %vm828, %v820, 0.0
  %v998 = vrot.slane %v997, 4
  %v999 = vadd.f32 %v997, %v998
  %v1000 = vrot.slane %v999, 2
  %v1001 = vadd.f32 %v999, %v1000
  %v1002 = vrot.slane %v1001, 1
  %v1003 = vadd.f32 %v1001, %v1002
  %v1004 = vsel %vm828, %v821, 0.0
  %v1005 = vrot.slane %v1004, 4
  %v1006 = vadd.f32 %v1004, %v1005
  %v1007 = vrot.slane %v1006, 2
  %v1008 = vadd.f32 %v1006, %v1007
  %v1009 = vrot.slane %v1008, 1
  %v1010 = vadd.f32 %v1008, %v1009
  %v1011 = vsel %vm828, %v822, 0.0
  %v1012 = vrot.slane %v1011, 4
  %v1013 = vadd.f32 %v1011, %v1012
  %v1014 = vrot.slane %v1013, 2
  %v1015 = vadd.f32 %v1013, %v1014
  %v1016 = vrot.slane %v1015, 1
  %v1017 = vadd.f32 %v1015, %v1016
  %v1018 = vsel %vm828, %v823, 0.0
  %v1019 = vrot.slane %v1018, 4
  %v1020 = vadd.f32 %v1018, %v1019
  %v1021 = vrot.slane %v1020, 2
  %v1022 = vadd.f32 %v1020, %v1021
  %v1023 = vrot.slane %v1022, 1
  %v1024 = vadd.f32 %v1022, %v1023
  %v1025 = vsel %vm828, %v824, 0.0
  %v1026 = vrot.slane %v1025, 4
  %v1027 = vadd.f32 %v1025, %v1026
  %v1028 = vrot.slane %v1027, 2
  %v1029 = vadd.f32 %v1027, %v1028
  %v1030 = vrot.slane %v1029, 1
  %v1031 = vadd.f32 %v1029, %v1030
  %v1032 = vsel %vm828, %v825, 0.0
  %v1033 = vrot.slane %v1032, 4
  %v1034 = vadd.f32 %v1032, %v1033
  %v1035 = vrot.slane %v1034, 2
  %v1036 = vadd.f32 %v1034, %v1035
  %v1037 = vrot.slane %v1036, 1
  %v1038 = vadd.f32 %v1036, %v1037
  %v1039 = vsel %vm828, %v826, 0.0
  %v1040 = vrot.slane %v1039, 4
  %v1041 = vadd.f32 %v1039, %v1040
  %v1042 = vrot.slane %v1041, 2
  %v1043 = vadd.f32 %v1041, %v1042
  %v1044 = vrot.slane %v1043, 1
  %v1045 = vadd.f32 %v1043, %v1044
  %v1046 = vsel %vm828, %v827, 0.0
  %v1047 = vrot.slane %v1046, 4
  %v1048 = vadd.f32 %v1046, %v1047
  %v1049 = vrot.slane %v1048, 2
  %v1050 = vadd.f32 %v1048, %v1049
  %v1051 = vrot.slane %v1050, 1
  %v1052 = vadd.f32 %v1050, %v1051
  %v1053 = vxor.u32 %v835, 2147483648
  %v1054 = vxor.u32 %v842, 2147483648
  %v1055 = vxor.u32 %v849, 2147483648
  %v1056 = vxor.u32 %v856, 2147483648
  %v1057 = vxor.u32 %v863, 2147483648
  %v1058 = vxor.u32 %v870, 2147483648
  %v1059 = vxor.u32 %v877, 2147483648
  %v1060 = vxor.u32 %v884, 2147483648
  %v1061 = vxor.u32 %v891, 2147483648
  %v1062 = vxor.u32 %v898, 2147483648
  %v1063 = vxor.u32 %v905, 2147483648
  %v1064 = vxor.u32 %v912, 2147483648
  %v1065 = vxor.u32 %v919, 2147483648
  %v1066 = vxor.u32 %v926, 2147483648
  %v1067 = vxor.u32 %v933, 2147483648
  %v1068 = vxor.u32 %v940, 2147483648
  %v1069 = vxor.u32 %v947, 2147483648
  %v1070 = vxor.u32 %v954, 2147483648
  %v1071 = vxor.u32 %v961, 2147483648
  %v1072 = vxor.u32 %v968, 2147483648
  %v1073 = vxor.u32 %v975, 2147483648
  %v1074 = vxor.u32 %v982, 2147483648
  %v1075 = vxor.u32 %v989, 2147483648
  %v1076 = vxor.u32 %v996, 2147483648
  %v1077 = vxor.u32 %v1003, 2147483648
  %v1078 = vxor.u32 %v1010, 2147483648
  %v1079 = vxor.u32 %v1017, 2147483648
  %v1080 = vxor.u32 %v1024, 2147483648
  %v1081 = vxor.u32 %v1031, 2147483648
  %v1082 = vxor.u32 %v1038, 2147483648
  %v1083 = vxor.u32 %v1045, 2147483648
  %v1084 = vxor.u32 %v1052, 2147483648
  %v1085 = vmul.f32 %v1053, 1.442695
  %v1086 = vpow.pop %v1085
  %v1087 = vmul.f32 %v1054, 1.442695
  %v1088 = vpow.pop %v1087
  %v1089 = vmul.f32 %v1055, 1.442695
  %v1090 = vpow.pop %v1089
  %v1091 = vmul.f32 %v1056, 1.442695
  %v1092 = vpow.pop %v1091
  %v1093 = vmul.f32 %v1057, 1.442695
  %v1094 = vpow.pop %v1093
  %v1095 = vmul.f32 %v1058, 1.442695
  %v1096 = vpow.pop %v1095
  %v1097 = vmul.f32 %v1059, 1.442695
  %v1098 = vpow.pop %v1097
  %v1099 = vmul.f32 %v1060, 1.442695
  %v1100 = vpow.pop %v1099
  %v1101 = vmul.f32 %v1061, 1.442695
  %v1102 = vpow.pop %v1101
  %v1103 = vmul.f32 %v1062, 1.442695
  %v1104 = vpow.pop %v1103
  %v1105 = vmul.f32 %v1063, 1.442695
  %v1106 = vpow.pop %v1105
  %v1107 = vmul.f32 %v1064, 1.442695
  %v1108 = vpow.pop %v1107
  %v1109 = vmul.f32 %v1065, 1.442695
  %v1110 = vpow.pop %v1109
  %v1111 = vmul.f32 %v1066, 1.442695
  %v1112 = vpow.pop %v1111
  %v1113 = vmul.f32 %v1067, 1.442695
  %v1114 = vpow.pop %v1113
  %v1115 = vmul.f32 %v1068, 1.442695
  %v1116 = vpow.pop %v1115
  %v1117 = vmul.f32 %v1069, 1.442695
  %v1118 = vpow.pop %v1117
  %v1119 = vmul.f32 %v1070, 1.442695
  %v1120 = vpow.pop %v1119
  %v1121 = vmul.f32 %v1071, 1.442695
  %v1122 = vpow.pop %v1121
  %v1123 = vmul.f32 %v1072, 1.442695
  %v1124 = vpow.pop %v1123
  %v1125 = vmul.f32 %v1073, 1.442695
  %v1126 = vpow.pop %v1125
  %v1127 = vmul.f32 %v1074, 1.442695
  %v1128 = vpow.pop %v1127
  %v1129 = vmul.f32 %v1075, 1.442695
  %v1130 = vpow.pop %v1129
  %v1131 = vmul.f32 %v1076, 1.442695
  %v1132 = vpow.pop %v1131
  %v1133 = vmul.f32 %v1077, 1.442695
  %v1134 = vpow.pop %v1133
  %v1135 = vmul.f32 %v1078, 1.442695
  %v1136 = vpow.pop %v1135
  %v1137 = vmul.f32 %v1079, 1.442695
  %v1138 = vpow.pop %v1137
  %v1139 = vmul.f32 %v1080, 1.442695
  %v1140 = vpow.pop %v1139
  %v1141 = vmul.f32 %v1081, 1.442695
  %v1142 = vpow.pop %v1141
  %v1143 = vmul.f32 %v1082, 1.442695
  %v1144 = vpow.pop %v1143
  %v1145 = vmul.f32 %v1083, 1.442695
  %v1146 = vpow.pop %v1145
  %v1147 = vmul.f32 %v1084, 1.442695
  %v1148 = vpow.pop %v1147
  %v1149 = vadd.f32 %v1086, 1.0
  %v1150 = vadd.f32 %v1088, 1.0
  %v1151 = vadd.f32 %v1090, 1.0
  %v1152 = vadd.f32 %v1092, 1.0
  %v1153 = vadd.f32 %v1094, 1.0
  %v1154 = vadd.f32 %v1096, 1.0
  %v1155 = vadd.f32 %v1098, 1.0
  %v1156 = vadd.f32 %v1100, 1.0
  %v1157 = vadd.f32 %v1102, 1.0
  %v1158 = vadd.f32 %v1104, 1.0
  %v1159 = vadd.f32 %v1106, 1.0
  %v1160 = vadd.f32 %v1108, 1.0
  %v1161 = vadd.f32 %v1110, 1.0
  %v1162 = vadd.f32 %v1112, 1.0
  %v1163 = vadd.f32 %v1114, 1.0
  %v1164 = vadd.f32 %v1116, 1.0
  %v1165 = vadd.f32 %v1118, 1.0
  %v1166 = vadd.f32 %v1120, 1.0
  %v1167 = vadd.f32 %v1122, 1.0
  %v1168 = vadd.f32 %v1124, 1.0
  %v1169 = vadd.f32 %v1126, 1.0
  %v1170 = vadd.f32 %v1128, 1.0
  %v1171 = vadd.f32 %v1130, 1.0
  %v1172 = vadd.f32 %v1132, 1.0
  %v1173 = vadd.f32 %v1134, 1.0
  %v1174 = vadd.f32 %v1136, 1.0
  %v1175 = vadd.f32 %v1138, 1.0
  %v1176 = vadd.f32 %v1140, 1.0
  %v1177 = vadd.f32 %v1142, 1.0
  %v1178 = vadd.f32 %v1144, 1.0
  %v1179 = vadd.f32 %v1146, 1.0
  %v1180 = vadd.f32 %v1148, 1.0
  %v1181 = vrcp.pop %v1149
  %v1182 = vmul.f32 1.0, %v1181
  %v1183 = vrcp.pop %v1150
  %v1184 = vmul.f32 1.0, %v1183
  %v1185 = vrcp.pop %v1151
  %v1186 = vmul.f32 1.0, %v1185
  %v1187 = vrcp.pop %v1152
  %v1188 = vmul.f32 1.0, %v1187
  %v1189 = vrcp.pop %v1153
  %v1190 = vmul.f32 1.0, %v1189
  %v1191 = vrcp.pop %v1154
  %v1192 = vmul.f32 1.0, %v1191
  %v1193 = vrcp.pop %v1155
  %v1194 = vmul.f32 1.0, %v1193
  %v1195 = vrcp.pop %v1156
  %v1196 = vmul.f32 1.0, %v1195
  %v1197 = vrcp.pop %v1157
  %v1198 = vmul.f32 1.0, %v1197
  %v1199 = vrcp.pop %v1158
  %v1200 = vmul.f32 1.0, %v1199
  %v1201 = vrcp.pop %v1159
  %v1202 = vmul.f32 1.0, %v1201
  %v1203 = vrcp.pop %v1160
  %v1204 = vmul.f32 1.0, %v1203
  %v1205 = vrcp.pop %v1161
  %v1206 = vmul.f32 1.0, %v1205
  %v1207 = vrcp.pop %v1162
  %v1208 = vmul.f32 1.0, %v1207
  %v1209 = vrcp.pop %v1163
  %v1210 = vmul.f32 1.0, %v1209
  %v1211 = vrcp.pop %v1164
  %v1212 = vmul.f32 1.0, %v1211
  %v1213 = vrcp.pop %v1165
  %v1214 = vmul.f32 1.0, %v1213
  %v1215 = vrcp.pop %v1166
  %v1216 = vmul.f32 1.0, %v1215
  %v1217 = vrcp.pop %v1167
  %v1218 = vmul.f32 1.0, %v1217
  %v1219 = vrcp.pop %v1168
  %v1220 = vmul.f32 1.0, %v1219
  %v1221 = vrcp.pop %v1169
  %v1222 = vmul.f32 1.0, %v1221
  %v1223 = vrcp.pop %v1170
  %v1224 = vmul.f32 1.0, %v1223
  %v1225 = vrcp.pop %v1171
  %v1226 = vmul.f32 1.0, %v1225
  %v1227 = vrcp.pop %v1172
  %v1228 = vmul.f32 1.0, %v1227
  %v1229 = vrcp.pop %v1173
  %v1230 = vmul.f32 1.0, %v1229
  %v1231 = vrcp.pop %v1174
  %v1232 = vmul.f32 1.0, %v1231
  %v1233 = vrcp.pop %v1175
  %v1234 = vmul.f32 1.0, %v1233
  %v1235 = vrcp.pop %v1176
  %v1236 = vmul.f32 1.0, %v1235
  %v1237 = vrcp.pop %v1177
  %v1238 = vmul.f32 1.0, %v1237
  %v1239 = vrcp.pop %v1178
  %v1240 = vmul.f32 1.0, %v1239
  %v1241 = vrcp.pop %v1179
  %v1242 = vmul.f32 1.0, %v1241
  %v1243 = vrcp.pop %v1180
  %v1244 = vmul.f32 1.0, %v1243
  %v1245 = vld [vmem:[%s6] sm:$0x3f]
  %v1278 = vsel %vm793, %v1184, %v1182
  %vm1279 = vcmask 1042434
  %v1280 = vsel %vm1279, %v1186, %v1278
  %vm1281 = vcmask 1043459
  %v1282 = vsel %vm1281, %v1188, %v1280
  %vm1283 = vcmask 1044484
  %v1284 = vsel %vm1283, %v1190, %v1282
  %vm1285 = vcmask 1045509
  %v1286 = vsel %vm1285, %v1192, %v1284
  %vm1287 = vcmask 1046534
  %v1288 = vsel %vm1287, %v1194, %v1286
  %vm1289 = vcmask 1047559
  %v1290 = vsel %vm1289, %v1196, %v1288
  %v1291 = vsel %vm793, %v1200, %v1198
  %v1292 = vsel %vm1279, %v1202, %v1291
  %v1293 = vsel %vm1281, %v1204, %v1292
  %v1294 = vsel %vm1283, %v1206, %v1293
  %v1295 = vsel %vm1285, %v1208, %v1294
  %v1296 = vsel %vm1287, %v1210, %v1295
  %v1297 = vsel %vm1289, %v1212, %v1296
  %v1298 = vsel %vm793, %v1216, %v1214
  %v1299 = vsel %vm1279, %v1218, %v1298
  %v1300 = vsel %vm1281, %v1220, %v1299
  %v1301 = vsel %vm1283, %v1222, %v1300
  %v1302 = vsel %vm1285, %v1224, %v1301
  %v1303 = vsel %vm1287, %v1226, %v1302
  %v1304 = vsel %vm1289, %v1228, %v1303
  %v1305 = vsel %vm793, %v1232, %v1230
  %v1306 = vsel %vm1279, %v1234, %v1305
  %v1307 = vsel %vm1281, %v1236, %v1306
  %v1308 = vsel %vm1283, %v1238, %v1307
  %v1309 = vsel %vm1285, %v1240, %v1308
  %v1310 = vsel %vm1287, %v1242, %v1309
  %v1311 = vsel %vm1289, %v1244, %v1310
  %v1313 = vcombine.high %v1245, %v1245
  %v1315 = vunpack.c.l.s4 1983009808
  %v1316 = vunpack.c.0.s8 %v1315
  %v1317 = vlaneseq
  %v1318 = vshrl.u32 %v1317, 7
  %v1319 = vsub.s32 %v1316, %v1318
  %v1320 = vrot.slane %v1245, %v1319
  %v1322 = vunpack.c.l.s4 1983009808
  %v1323 = vunpack.c.0.s8 %v1322
  %v1324 = vlaneseq
  %v1325 = vshrl.u32 %v1324, 7
  %v1326 = vsub.s32 %v1323, %v1325
  %v1327 = vrot.slane %v1313, %v1326
  %v1328 = vcombine.high %v1320, %v1320
  %v1329 = vsel %vm534, %v1290, 0
  %v1331 = vsel %vm534, %v1297, 0
  %v1333 = vsel %vm534, %v1304, 0
  %v1335 = vsel %vm534, %v1311, 0
  %vm1337 = vcmask 1041408
  %v1338 = vsel %vm1337, %v1320, 0
  %v1340 = vsel %vm1337, %v1328, 0
  %v1342 = vsel %vm1337, %v1327, 0
  %1344 = vmatprep.subr.mxu0 %v1340
  %1345 = vmatpush1.msra.mxu0 %v1338
  %1346 = vmatprep.subr.mxu0 0.0
  %1347 = vmatpush1.msra.mxu0 0.0
  %1348 = vmatprep.subr.mxu0 0.0
  %1349 = vmatpush1.msra.mxu0 0.0
  %1350 = vmatprep.subr.mxu0 0.0
  %1351 = vmatpush1.msra.mxu0 0.0
  %1352 = vmatprep.subr.mxu0 0.0
  %1353 = vmatpush1.msra.mxu0 0.0
  %1354 = vmatprep.subr.mxu0 0.0
  %1355 = vmatpush1.msra.mxu0 0.0
  %1356 = vmatprep.subr.mxu0 0.0
  %1357 = vmatpush1.msra.mxu0 0.0
  %1358 = vmatprep.subr.mxu0 0.0
  %1359 = vmatpush1.msra.mxu0 0.0
  %1360 = vmatprep.subr.mxu0 0.0
  %1361 = vmatpush1.msra.mxu0 0.0
  %1362 = vmatprep.subr.mxu0 0.0
  %1363 = vmatpush1.msra.mxu0 0.0
  %1364 = vmatprep.subr.mxu0 0.0
  %1365 = vmatpush1.msra.mxu0 0.0
  %1366 = vmatprep.subr.mxu0 0.0
  %1367 = vmatpush1.msra.mxu0 0.0
  %1368 = vmatprep.subr.mxu0 0.0
  %1369 = vmatpush1.msra.mxu0 0.0
  %1370 = vmatprep.subr.mxu0 0.0
  %1371 = vmatpush1.msra.mxu0 0.0
  %1372 = vmatprep.subr.mxu0 0.0
  %1373 = vmatpush1.msra.mxu0 0.0
  %1374 = vmatprep.subr.mxu0 0.0
  %1375 = vmatpush1.msra.mxu0 0.0
  %1376 = vmatprep.subr.mxu0 0.0
  %1377 = vmatpush1.msra.mxu0 0.0
  %1378 = vmatprep.subr.mxu0 0.0
  %1379 = vmatpush1.msra.mxu0 0.0
  %1380 = vmatprep.subr.mxu0 0.0
  %1381 = vmatpush1.msra.mxu0 0.0
  %1382 = vmatprep.subr.mxu0 0.0
  %1383 = vmatpush1.msra.mxu0 0.0
  %1384 = vmatprep.subr.mxu0 0.0
  %1385 = vmatpush1.msra.mxu0 0.0
  %1386 = vmatprep.subr.mxu0 0.0
  %1387 = vmatpush1.msra.mxu0 0.0
  %1388 = vmatprep.subr.mxu0 0.0
  %1389 = vmatpush1.msra.mxu0 0.0
  %1390 = vmatprep.subr.mxu0 0.0
  %1391 = vmatpush1.msra.mxu0 0.0
  %1392 = vmatprep.subr.mxu0 0.0
  %1393 = vmatpush1.msra.mxu0 0.0
  %1394 = vmatprep.subr.mxu0 0.0
  %1395 = vmatpush1.msra.mxu0 0.0
  %1396 = vmatprep.subr.mxu0 0.0
  %1397 = vmatpush1.msra.mxu0 0.0
  %1398 = vmatprep.subr.mxu0 0.0
  %1399 = vmatpush1.msra.mxu0 0.0
  %1400 = vmatprep.subr.mxu0 0.0
  %1401 = vmatpush1.msra.mxu0 0.0
  %1402 = vmatprep.subr.mxu0 0.0
  %1403 = vmatpush1.msra.mxu0 0.0
  %1404 = vmatprep.subr.mxu0 0.0
  %1405 = vmatpush1.msra.mxu0 0.0
  %1406 = vmatprep.subr.mxu0 0.0
  %1407 = vmatpush1.msra.mxu0 0.0
  %1408 = vmatprep.mubr.f32.mxu0 0.0
  %1409 = vmatmul.mubr.f32.gmra.mrb[0].mxu0 %v1329
  %v1410 = vpop.f32.mrb[0].mxu0
  %v1411 = vadd.f32 0.0, %v1410
  %v1412 = vpop.f32.mrb[0].mxu0
  %v1413 = vadd.f32 0.0, %v1412
  %1414 = vmatprep.mubr.f32.mxu0 0.0
  %1415 = vmatmul.mubr.f32.gmra.mrb[0].mxu0 %v1331
  %v1416 = vpop.f32.mrb[0].mxu0
  %v1417 = vadd.f32 0.0, %v1416
  %v1418 = vpop.f32.mrb[0].mxu0
  %v1419 = vadd.f32 0.0, %v1418
  %1420 = vmatprep.mubr.f32.mxu0 0.0
  %1421 = vmatmul.mubr.f32.gmra.mrb[0].mxu0 %v1333
  %v1422 = vpop.f32.mrb[0].mxu0
  %v1423 = vadd.f32 0.0, %v1422
  %v1424 = vpop.f32.mrb[0].mxu0
  %v1425 = vadd.f32 0.0, %v1424
  %1426 = vmatprep.mubr.f32.mxu0 0.0
  %1427 = vmatmul.mubr.f32.gmra.mrb[0].mxu0 %v1335
  %v1428 = vpop.f32.mrb[0].mxu0
  %v1429 = vadd.f32 0.0, %v1428
  %v1430 = vpop.f32.mrb[0].mxu0
  %v1431 = vadd.f32 0.0, %v1430
  %1432 = vdwg.mxu0
  %1433 = vmatprep.subr.mxu0 0.0
  %1434 = vmatpush1.msra.mxu0 %v1342
  %1435 = vmatprep.subr.mxu0 0.0
  %1436 = vmatpush1.msra.mxu0 0.0
  %1437 = vmatprep.subr.mxu0 0.0
  %1438 = vmatpush1.msra.mxu0 0.0
  %1439 = vmatprep.subr.mxu0 0.0
  %1440 = vmatpush1.msra.mxu0 0.0
  %1441 = vmatprep.subr.mxu0 0.0
  %1442 = vmatpush1.msra.mxu0 0.0
  %1443 = vmatprep.subr.mxu0 0.0
  %1444 = vmatpush1.msra.mxu0 0.0
  %1445 = vmatprep.subr.mxu0 0.0
  %1446 = vmatpush1.msra.mxu0 0.0
  %1447 = vmatprep.subr.mxu0 0.0
  %1448 = vmatpush1.msra.mxu0 0.0
  %1449 = vmatprep.subr.mxu0 0.0
  %1450 = vmatpush1.msra.mxu0 0.0
  %1451 = vmatprep.subr.mxu0 0.0
  %1452 = vmatpush1.msra.mxu0 0.0
  %1453 = vmatprep.subr.mxu0 0.0
  %1454 = vmatpush1.msra.mxu0 0.0
  %1455 = vmatprep.subr.mxu0 0.0
  %1456 = vmatpush1.msra.mxu0 0.0
  %1457 = vmatprep.subr.mxu0 0.0
  %1458 = vmatpush1.msra.mxu0 0.0
  %1459 = vmatprep.subr.mxu0 0.0
  %1460 = vmatpush1.msra.mxu0 0.0
  %1461 = vmatprep.subr.mxu0 0.0
  %1462 = vmatpush1.msra.mxu0 0.0
  %1463 = vmatprep.subr.mxu0 0.0
  %1464 = vmatpush1.msra.mxu0 0.0
  %1465 = vmatprep.subr.mxu0 0.0
  %1466 = vmatpush1.msra.mxu0 0.0
  %1467 = vmatprep.subr.mxu0 0.0
  %1468 = vmatpush1.msra.mxu0 0.0
  %1469 = vmatprep.subr.mxu0 0.0
  %1470 = vmatpush1.msra.mxu0 0.0
  %1471 = vmatprep.subr.mxu0 0.0
  %1472 = vmatpush1.msra.mxu0 0.0
  %1473 = vmatprep.subr.mxu0 0.0
  %1474 = vmatpush1.msra.mxu0 0.0
  %1475 = vmatprep.subr.mxu0 0.0
  %1476 = vmatpush1.msra.mxu0 0.0
  %1477 = vmatprep.subr.mxu0 0.0
  %1478 = vmatpush1.msra.mxu0 0.0
  %1479 = vmatprep.subr.mxu0 0.0
  %1480 = vmatpush1.msra.mxu0 0.0
  %1481 = vmatprep.subr.mxu0 0.0
  %1482 = vmatpush1.msra.mxu0 0.0
  %1483 = vmatprep.subr.mxu0 0.0
  %1484 = vmatpush1.msra.mxu0 0.0
  %1485 = vmatprep.subr.mxu0 0.0
  %1486 = vmatpush1.msra.mxu0 0.0
  %1487 = vmatprep.subr.mxu0 0.0
  %1488 = vmatpush1.msra.mxu0 0.0
  %1489 = vmatprep.subr.mxu0 0.0
  %1490 = vmatpush1.msra.mxu0 0.0
  %1491 = vmatprep.subr.mxu0 0.0
  %1492 = vmatpush1.msra.mxu0 0.0
  %1493 = vmatprep.subr.mxu0 0.0
  %1494 = vmatpush1.msra.mxu0 0.0
  %1495 = vmatprep.subr.mxu0 0.0
  %1496 = vmatpush1.msra.mxu0 0.0
  %1497 = vmatprep.mubr.f32.mxu0 0.0
  %1498 = vmatmul.mubr.f32.gmra.mrb[0].mxu0 %v1329
  %v1499 = vpop.f32.mrb[0].mxu0
  %v1500 = vadd.f32 0.0, %v1499
  %v1501 = vpop.f32.mrb[0].mxu0
  %1502 = vmatprep.mubr.f32.mxu0 0.0
  %1503 = vmatmul.mubr.f32.gmra.mrb[0].mxu0 %v1331
  %v1504 = vpop.f32.mrb[0].mxu0
  %v1505 = vadd.f32 0.0, %v1504
  %v1506 = vpop.f32.mrb[0].mxu0
  %1507 = vmatprep.mubr.f32.mxu0 0.0
  %1508 = vmatmul.mubr.f32.gmra.mrb[0].mxu0 %v1333
  %v1509 = vpop.f32.mrb[0].mxu0
  %v1510 = vadd.f32 0.0, %v1509
  %v1511 = vpop.f32.mrb[0].mxu0
  %1512 = vmatprep.mubr.f32.mxu0 0.0
  %1513 = vmatmul.mubr.f32.gmra.mrb[0].mxu0 %v1335
  %v1514 = vpop.f32.mrb[0].mxu0
  %v1515 = vadd.f32 0.0, %v1514
  %v1516 = vpop.f32.mrb[0].mxu0
  %1517 = vdwg.mxu0
  %v1518 = vmul.f32 %v256, %v1411
  %v1519 = vmul.f32 %v257, %v1413
  %v1520 = vmul.f32 %v258, %v1500
  %v1521 = vmul.f32 %v259, %v1417
  %v1522 = vmul.f32 %v260, %v1419
  %v1523 = vmul.f32 %v261, %v1505
  %v1524 = vmul.f32 %v262, %v1423
  %v1525 = vmul.f32 %v263, %v1425
  %v1526 = vmul.f32 %v264, %v1510
  %v1527 = vmul.f32 %v265, %v1429
  %v1528 = vmul.f32 %v266, %v1431
  %v1529 = vmul.f32 %v267, %v1515
  %1530 = vst [vmem:[%s7] sm:$0xff] %v1518
  %1531 = vst [vmem:[%s7 + $0x8] sm:$0xff] %v1519
  %1532 = vst.msk [vmem:[%s7 + $0x10] sm:$0xff] %vm304, %v1520
  %1533 = vst [vmem:[%s7 + $0x18] sm:$0xff] %v1521
  %1534 = vst [vmem:[%s7 + $0x20] sm:$0xff] %v1522
  %1535 = vst.msk [vmem:[%s7 + $0x28] sm:$0xff] %vm304, %v1523
  %1536 = vst [vmem:[%s7 + $0x30] sm:$0xff] %v1524
  %1537 = vst [vmem:[%s7 + $0x38] sm:$0xff] %v1525
  %1538 = vst.msk [vmem:[%s7 + $0x40] sm:$0xff] %vm304, %v1526
  %1539 = vst [vmem:[%s7 + $0x48] sm:$0xff] %v1527
  %1540 = vst [vmem:[%s7 + $0x50] sm:$0xff] %v1528
  %1541 = vst.msk [vmem:[%s7 + $0x58] sm:$0xff] %vm304, %v1529
  // Predicated region
  $region30: #{freq_conv_block.1} parent=0 // pred_check
    _
  $region31: #{freq_conv_block.1} parent=0 // pred_check_branch
    %1543 = sbr.rel (0) target = $region33
  $region32: #{freq_conv_block.1} parent=0 // pred_region
    _
  $region33: #{freq_conv_block.1} parent=0 // pred_fallthru
    _
  // Predicated region
  $region34: #{freq_conv_block.1} parent=0 // pred_check
    _
  $region35: #{freq_conv_block.1} parent=0 // pred_check_branch
    %1545 = sbr.rel (0) target = $region37
  $region36: #{freq_conv_block.1} parent=0 // pred_region
    _
  $region37: #{freq_conv_block.1} parent=0 // pred_fallthru
    _

</llo_original>
